<compile_context>
chip_gen: v6e
topology: v6e:2x2x1
jax: 0.10.0
libtpu: 0.0.40
codegen_flags: <defaults>
</compile_context>

<pallas_src>
import math
from functools import partial

import jax
import jax.numpy as jnp
from jax import lax
from jax.experimental import pallas as pl
from jax.experimental.pallas import tpu as pltpu

_BF16 = jnp.bfloat16
_F32 = jnp.float32
_VMEM_LIMIT = 32 * 1024 * 1024  # explicit scoped-VMEM budget; leaves headroom on v7x (64 MiB)


# --------------------------- in-kernel helpers ------------------------------ #

def _split_heads(x2d, num_heads, head_dim):
    """(T, E) -> (H, T, Dh).  Static lane slices + leading-axis stack: pure data
    movement (relayout); all matmuls below run as single head-batched dot_generals."""
    return jnp.stack(
        [x2d[:, h * head_dim:(h + 1) * head_dim] for h in range(num_heads)], axis=0)


def _merge_heads(xh):
    """(H, T, Dh) -> (T, H*Dh) via lane-axis concat."""
    return jnp.concatenate([xh[h] for h in range(xh.shape[0])], axis=-1)


def _attention_core(q, k, v, num_heads, head_dim):
    """Head-batched scaled dot-product attention.
    q: (L, E) f32, k/v: (S, E) f32 -> (L, E) f32 (pre output-projection)."""
    scale = 1.0 / math.sqrt(head_dim)
    qh = _split_heads(q * scale, num_heads, head_dim).astype(_BF16)   # (H, L, Dh)
    kh = _split_heads(k, num_heads, head_dim).astype(_BF16)           # (H, S, Dh)
    vh = _split_heads(v, num_heads, head_dim).astype(_BF16)           # (H, S, Dh)
    s = jnp.einsum('hld,hsd->hls', qh, kh, preferred_element_type=_F32)
    s = s - jnp.max(s, axis=-1, keepdims=True)
    p = jnp.exp(s)
    # EUP reciprocal (otherwise-idle slot) instead of a VPU divide.
    p = p * pl.reciprocal(jnp.sum(p, axis=-1, keepdims=True), approx=True)
    oh = jnp.einsum('hls,hsd->hld', p.astype(_BF16), vh, preferred_element_type=_F32)
    return _merge_heads(oh)                                            # (L, E) f32


def _residual_layernorm(x, delta, gamma, beta):
    """LayerNorm(x + delta), eps=1e-5 (PyTorch semantics); stats in f32."""
    y = x + delta
    mean = jnp.mean(y, axis=-1, keepdims=True)
    d = y - mean
    var = jnp.mean(d * d, axis=-1, keepdims=True)
    return d * lax.rsqrt(var + 1e-5) * gamma + beta


# ----------------------------- Pallas kernels ------------------------------ #

def _self_attn_block_kernel(num_heads, head_dim,
                            x_ref, wqkv_ref, bqkv_ref, wo_ref, bo_ref,
                            g_ref, bt_ref, o_ref):
    """y = LayerNorm(x + SelfAttention(x)); one batch element per grid step."""
    x = x_ref[0]                                                      # (L, E) f32
    E = x.shape[-1]
    # Fused QKV projection: one (L,E) @ (E,3E) bf16 matmul, f32 accumulation.
    qkv = jnp.dot(x.astype(_BF16), wqkv_ref[...],
                  preferred_element_type=_F32) + bqkv_ref[...]        # (L, 3E)
    attn = _attention_core(qkv[:, :E], qkv[:, E:2 * E], qkv[:, 2 * E:],
                           num_heads, head_dim)
    attn = jnp.dot(attn.astype(_BF16), wo_ref[...],
                   preferred_element_type=_F32) + bo_ref[...]
    o_ref[0] = _residual_layernorm(x, attn, g_ref[...], bt_ref[...]).astype(o_ref.dtype)


def _cross_attn_block_kernel(num_heads, head_dim,
                             xq_ref, mem_ref, wq_ref, bq_ref, wkv_ref, bkv_ref,
                             wo_ref, bo_ref, g_ref, bt_ref, o_ref):
    """y = LayerNorm(xq + CrossAttention(xq, mem, mem)); one batch element per step."""
    xq = xq_ref[0]                                                    # (L, E) f32
    mem = mem_ref[0]                                                  # (S, E) f32
    E = xq.shape[-1]
    q = jnp.dot(xq.astype(_BF16), wq_ref[...],
                preferred_element_type=_F32) + bq_ref[...]
    kv = jnp.dot(mem.astype(_BF16), wkv_ref[...],
                 preferred_element_type=_F32) + bkv_ref[...]          # (S, 2E)
    attn = _attention_core(q, kv[:, :E], kv[:, E:], num_heads, head_dim)
    attn = jnp.dot(attn.astype(_BF16), wo_ref[...],
                   preferred_element_type=_F32) + bo_ref[...]
    o_ref[0] = _residual_layernorm(xq, attn, g_ref[...], bt_ref[...]).astype(o_ref.dtype)


def _ffn_block_kernel(x_ref, w1_ref, b1_ref, w2_ref, b2_ref, g_ref, bt_ref, o_ref):
    """y = LayerNorm(x + Linear(ReLU(Linear(x)))) for one row tile."""
    x = x_ref[...]                                                    # (TM, E) f32
    h = jnp.dot(x.astype(_BF16), w1_ref[...],
                preferred_element_type=_F32) + b1_ref[...]            # (TM, F)
    h = jnp.maximum(h, 0.0)
    ff = jnp.dot(h.astype(_BF16), w2_ref[...],
                 preferred_element_type=_F32) + b2_ref[...]           # (TM, E)
    o_ref[...] = _residual_layernorm(x, ff, g_ref[...], bt_ref[...]).astype(o_ref.dtype)


# ------------------------------ Pallas wrappers ----------------------------- #

def _full_spec(arr):
    nd = arr.ndim
    return pl.BlockSpec(arr.shape, lambda *_: (0,) * nd)


def _compiler_params(n_parallel_axes=1):
    return pltpu.CompilerParams(
        dimension_semantics=("parallel",) * n_parallel_axes,
        vmem_limit_bytes=_VMEM_LIMIT)


def fused_self_attention_block(x, wqkv, bqkv, wo, bo, gamma, beta, num_heads):
    """x: (N, L, E) f32 -> LayerNorm(x + MHA(x, x, x)); single fused kernel."""
    N, L, E = x.shape
    head_dim = E // num_heads
    g2 = gamma.reshape(1, E)
    bt2 = beta.reshape(1, E)
    return pl.pallas_call(
        partial(_self_attn_block_kernel, num_heads, head_dim),
        out_shape=jax.ShapeDtypeStruct((N, L, E), x.dtype),
        grid=(N,),
        in_specs=[
            pl.BlockSpec((1, L, E), lambda b: (b, 0, 0)),
            _full_spec(wqkv), _full_spec(bqkv), _full_spec(wo), _full_spec(bo),
            _full_spec(g2), _full_spec(bt2),
        ],
        out_specs=pl.BlockSpec((1, L, E), lambda b: (b, 0, 0)),
        input_output_aliases={0: 0},          # residual input aliases the output
        compiler_params=_compiler_params(),
    )(x, wqkv, bqkv, wo, bo, g2, bt2)


def fused_cross_attention_block(xq, mem, wq, bq, wkv, bkv, wo, bo, gamma, beta, num_heads):
    """xq: (N, L, E), mem: (N, S, E) -> LayerNorm(xq + MHA(xq, mem, mem))."""
    N, L, E = xq.shape
    S = mem.shape[1]
    head_dim = E // num_heads
    g2 = gamma.reshape(1, E)
    bt2 = beta.reshape(1, E)
    return pl.pallas_call(
        partial(_cross_attn_block_kernel, num_heads, head_dim),
        out_shape=jax.ShapeDtypeStruct((N, L, E), xq.dtype),
        grid=(N,),
        in_specs=[
            pl.BlockSpec((1, L, E), lambda b: (b, 0, 0)),
            pl.BlockSpec((1, S, E), lambda b: (b, 0, 0)),
            _full_spec(wq), _full_spec(bq), _full_spec(wkv), _full_spec(bkv),
            _full_spec(wo), _full_spec(bo), _full_spec(g2), _full_spec(bt2),
        ],
        out_specs=pl.BlockSpec((1, L, E), lambda b: (b, 0, 0)),
        input_output_aliases={0: 0},
        compiler_params=_compiler_params(),
    )(xq, mem, wq, bq, wkv, bkv, wo, bo, g2, bt2)


def _pick_row_tile(rows):
    """Largest 8-multiple row tile that divides `rows` and yields >=2 grid steps."""
    for t in (512, 256, 128, 64, 32, 16, 8):
        if rows % t == 0 and rows // t >= 2:
            return t
    return rows


def fused_ffn_block(x, w1t, b1, w2t, b2, gamma, beta):
    """x: (N, L, E) -> LayerNorm(x + FFN(x)), row-tiled over N*L."""
    N, L, E = x.shape
    rows = N * L
    tm = _pick_row_tile(rows)
    g2 = gamma.reshape(1, E)
    bt2 = beta.reshape(1, E)
    x2 = x.reshape(rows, E)
    y = pl.pallas_call(
        _ffn_block_kernel,
        out_shape=jax.ShapeDtypeStruct((rows, E), x.dtype),
        grid=(rows // tm,),
        in_specs=[
            pl.BlockSpec((tm, E), lambda i: (i, 0)),
            _full_spec(w1t), _full_spec(b1), _full_spec(w2t), _full_spec(b2),
            _full_spec(g2), _full_spec(bt2),
        ],
        out_specs=pl.BlockSpec((tm, E), lambda i: (i, 0)),
        input_output_aliases={0: 0},
        compiler_params=_compiler_params(),
    )(x2, w1t, b1, w2t, b2, g2, bt2)
    return y.reshape(N, L, E)


# ------------------------------ parameter setup ----------------------------- #

def _linear_params(key, out_dim, in_dim, scale=0.05):
    kw, kb = jax.random.split(key)
    w = scale * jax.random.normal(kw, (out_dim, in_dim), _F32)
    b = scale * jax.random.normal(kb, (out_dim,), _F32)
    return w, b


def _mha_params(key, embed_dim):
    ks = jax.random.split(key, 4)
    wq, bq = _linear_params(ks[0], embed_dim, embed_dim)
    wk, bk = _linear_params(ks[1], embed_dim, embed_dim)
    wv, bv = _linear_params(ks[2], embed_dim, embed_dim)
    wo, bo = _linear_params(ks[3], embed_dim, embed_dim)
    return (wq, wk, wv, bq, bk, bv, wo, bo)


def _prep_self_attn_kernel_params(params):
    """Pre-transpose + fuse QKV weights; cast weights to bf16 (biases stay f32)."""
    wq, wk, wv, bq, bk, bv, wo, bo = params
    E = wq.shape[0]
    wqkv = jnp.concatenate([wq.T, wk.T, wv.T], axis=1).astype(_BF16)   # (E, 3E)
    bqkv = jnp.concatenate([bq, bk, bv]).reshape(1, 3 * E)
    return wqkv, bqkv, wo.T.astype(_BF16), bo.reshape(1, E)


def _prep_cross_attn_kernel_params(params):
    wq, wk, wv, bq, bk, bv, wo, bo = params
    E = wq.shape[0]
    wkv = jnp.concatenate([wk.T, wv.T], axis=1).astype(_BF16)          # (E, 2E)
    bkv = jnp.concatenate([bk, bv]).reshape(1, 2 * E)
    return (wq.T.astype(_BF16), bq.reshape(1, E), wkv, bkv,
            wo.T.astype(_BF16), bo.reshape(1, E))


class TransformerBlock:
    """JAX/Pallas port of the PyTorch TransformerBlock (eval-mode dropout)."""

    def __init__(self, embed_dim, num_heads, ff_dim, dropout=0.1, is_decoder=False,
                 key=None):
        del dropout  # identity at inference
        if key is None:
            key = jax.random.PRNGKey(0)
        self.is_decoder = is_decoder
        self.num_heads = num_heads
        ks = jax.random.split(key, 4)
        # f32, PyTorch-layout parameters (kept for the pure-JAX reference).
        self.self_attn = _mha_params(ks[0], embed_dim)
        self._self_k = _prep_self_attn_kernel_params(self.self_attn)
        if is_decoder:
            self.enc_attn = _mha_params(ks[1], embed_dim)
            self._enc_k = _prep_cross_attn_kernel_params(self.enc_attn)
        self.g1 = jnp.ones((embed_dim,), _F32)
        self.b1 = jnp.zeros((embed_dim,), _F32)
        self.g2 = jnp.ones((embed_dim,), _F32)
        self.b2 = jnp.zeros((embed_dim,), _F32)
        if is_decoder:
            self.g3 = jnp.ones((embed_dim,), _F32)
            self.b3 = jnp.zeros((embed_dim,), _F32)
        w1, b1 = _linear_params(ks[2], ff_dim, embed_dim)
        w2, b2 = _linear_params(ks[3], embed_dim, ff_dim)
        self.ff_params = (w1, b1, w2, b2)
        self._ff_k = (w1.T.astype(_BF16), b1.reshape(1, ff_dim),
                      w2.T.astype(_BF16), b2.reshape(1, embed_dim))

    def __call__(self, x, memory=None):
        # public layout: (seq, batch, embed); kernels use (batch, seq, embed)
        xb = jnp.transpose(x, (1, 0, 2))
        xb = fused_self_attention_block(xb, *self._self_k, self.g1, self.b1,
                                        self.num_heads)
        if self.is_decoder and memory is not None:
            mb = jnp.transpose(memory, (1, 0, 2))
            xb = fused_cross_attention_block(xb, mb, *self._enc_k, self.g2, self.b2,
                                             self.num_heads)
        gamma, beta = (self.g3, self.b3) if self.is_decoder else (self.g2, self.b2)
        xb = fused_ffn_block(xb, *self._ff_k, gamma, beta)
        return jnp.transpose(xb, (1, 0, 2))


# ------------------------- pure-JAX precision-matched reference ------------- #

def _ref_mha(xq, xkv, params, num_heads):
    wq, wk, wv, bq, bk, bv, wo, bo = params
    N, L, E = xq.shape
    S = xkv.shape[1]
    Dh = E // num_heads
    bf = _BF16
    q = jnp.einsum('nle,oe->nlo', xq.astype(bf), wq.astype(bf),
                   preferred_element_type=_F32) + bq
    k = jnp.einsum('nse,oe->nso', xkv.astype(bf), wk.astype(bf),
                   preferred_element_type=_F32) + bk
    v = jnp.einsum('nse,oe->nso', xkv.astype(bf), wv.astype(bf),
                   preferred_element_type=_F32) + bv
    q = q.reshape(N, L, num_heads, Dh).transpose(0, 2, 1, 3) * (1.0 / math.sqrt(Dh))
    k = k.reshape(N, S, num_heads, Dh).transpose(0, 2, 1, 3)
    v = v.reshape(N, S, num_heads, Dh).transpose(0, 2, 1, 3)
    s = jnp.einsum('nhld,nhsd->nhls', q.astype(bf), k.astype(bf),
                   preferred_element_type=_F32)
    p = jax.nn.softmax(s, axis=-1)
    o = jnp.einsum('nhls,nhsd->nhld', p.astype(bf), v.astype(bf),
                   preferred_element_type=_F32)
    o = o.transpose(0, 2, 1, 3).reshape(N, L, E)
    return jnp.einsum('nle,oe->nlo', o.astype(bf), wo.astype(bf),
                      preferred_element_type=_F32) + bo


def _ref_ln(y, g, b):
    mean = jnp.mean(y, axis=-1, keepdims=True)
    var = jnp.mean((y - mean) ** 2, axis=-1, keepdims=True)
    return (y - mean) * lax.rsqrt(var + 1e-5) * g + b


def _ref_ffn(x, w1, b1, w2, b2):
    bf = _BF16
    h = jnp.einsum('nle,fe->nlf', x.astype(bf), w1.astype(bf),
                   preferred_element_type=_F32) + b1
    h = jnp.maximum(h, 0.0)
    return jnp.einsum('nlf,ef->nle', h.astype(bf), w2.astype(bf),
                      preferred_element_type=_F32) + b2


def ref_forward(blk, x, memory=None):
    xb = jnp.transpose(x, (1, 0, 2))
    xb = _ref_ln(xb + _ref_mha(xb, xb, blk.self_attn, blk.num_heads), blk.g1, blk.b1)
    if blk.is_decoder and memory is not None:
        mb = jnp.transpose(memory, (1, 0, 2))
        xb = _ref_ln(xb + _ref_mha(xb, mb, blk.enc_attn, blk.num_heads), blk.g2, blk.b2)
    w1, b1, w2, b2 = blk.ff_params
    ff = _ref_ffn(xb, w1, b1, w2, b2)
    g, b = (blk.g3, blk.b3) if blk.is_decoder else (blk.g2, blk.b2)
    return jnp.transpose(_ref_ln(xb + ff, g, b), (1, 0, 2))


# ----------------------------------- main ----------------------------------- #

if __name__ == "__main__":
    L, N, E, H, F = 8, 2, 32, 4, 64
    k1, k2 = jax.random.split(jax.random.PRNGKey(0))
    x = jax.random.normal(k1, (L, N, E), _F32)
    memory = jax.random.normal(k2, (L, N, E), _F32)

    enc_block = TransformerBlock(E, H, F, is_decoder=False, key=jax.random.PRNGKey(1))
    dec_block = TransformerBlock(E, H, F, is_decoder=True, key=jax.random.PRNGKey(2))

    enc_fwd = jax.jit(lambda a: enc_block(a))
    dec_fwd = jax.jit(lambda a, m: dec_block(a, m))

    y_enc = jax.block_until_ready(enc_fwd(x))
    y_dec = jax.block_until_ready(dec_fwd(x, memory))

    assert y_enc.shape == (L, N, E) and y_dec.shape == (L, N, E)

    ref_enc = ref_forward(enc_block, x)
    ref_dec = ref_forward(dec_block, x, memory)
    err_enc = float(jnp.max(jnp.abs(y_enc - ref_enc)))
    err_dec = float(jnp.max(jnp.abs(y_dec - ref_dec)))
    assert jnp.allclose(y_enc, ref_enc, atol=5e-3, rtol=5e-3), err_enc
    assert jnp.allclose(y_dec, ref_dec, atol=5e-3, rtol=5e-3), err_dec

    print("KERNEL_OK")
</pallas_src>

<mosaic_0001>
module attributes {stable_mosaic.version = 11 : i64} {
  func.func @_ffn_block_kernel(%arg0: i32, %arg1: memref<8x32xf32, #tpu.memory_space<vmem>>, %arg2: memref<32x64xbf16, #tpu.memory_space<vmem>>, %arg3: memref<1x64xf32, #tpu.memory_space<vmem>>, %arg4: memref<64x32xbf16, #tpu.memory_space<vmem>>, %arg5: memref<1x32xf32, #tpu.memory_space<vmem>>, %arg6: memref<1x32xf32, #tpu.memory_space<vmem>>, %arg7: memref<1x32xf32, #tpu.memory_space<vmem>>, %arg8: memref<8x32xf32, #tpu.memory_space<vmem>>) attributes {dimension_semantics = [#tpu.dimension_semantics<parallel>], iteration_bounds = array<i64: 2>, scalar_prefetch = 0 : i64, scratch_operands = 0 : i64, tpu.core_type = #tpu.core_type<tc>, window_params = [{transform_indices = @transform_0, window_bounds = array<i64: 8, 32>}, {pipeline_mode = #tpu.pipeline_mode<synchronous>, transform_indices = @transform_1, window_bounds = array<i64: 32, 64>}, {pipeline_mode = #tpu.pipeline_mode<synchronous>, transform_indices = @transform_2, window_bounds = array<i64: 1, 64>}, {pipeline_mode = #tpu.pipeline_mode<synchronous>, transform_indices = @transform_3, window_bounds = array<i64: 64, 32>}, {pipeline_mode = #tpu.pipeline_mode<synchronous>, transform_indices = @transform_4, window_bounds = array<i64: 1, 32>}, {pipeline_mode = #tpu.pipeline_mode<synchronous>, transform_indices = @transform_5, window_bounds = array<i64: 1, 32>}, {pipeline_mode = #tpu.pipeline_mode<synchronous>, transform_indices = @transform_6, window_bounds = array<i64: 1, 32>}, {transform_indices = @transform_7, window_bounds = array<i64: 8, 32>}]} {
    %c0 = arith.constant 0 : index
    %c0_0 = arith.constant 0 : index
    %0 = vector.load %arg1[%c0, %c0_0] : memref<8x32xf32, #tpu.memory_space<vmem>>, vector<8x32xf32>
    %1 = arith.truncf %0 : vector<8x32xf32> to vector<8x32xbf16>
    %c0_1 = arith.constant 0 : index
    %c0_2 = arith.constant 0 : index
    %2 = vector.load %arg2[%c0_1, %c0_2] : memref<32x64xbf16, #tpu.memory_space<vmem>>, vector<32x64xbf16>
    %cst = arith.constant dense<0.000000e+00> : vector<8x64xf32>
    %3 = tpu.matmul %1, %2, %cst {dimension_numbers = #tpu.dot_dimension_numbers<[1], [0], [0], [1], [0, 0, 1, 1], [], []>} : vector<8x32xbf16>, vector<32x64xbf16>, vector<8x64xf32> -> vector<8x64xf32>
    %c0_3 = arith.constant 0 : index
    %c0_4 = arith.constant 0 : index
    %4 = vector.load %arg3[%c0_3, %c0_4] : memref<1x64xf32, #tpu.memory_space<vmem>>, vector<1x64xf32>
    %5 = vector.broadcast %4 : vector<1x64xf32> to vector<8x64xf32>
    %6 = arith.addf %3, %5 : vector<8x64xf32>
    %cst_5 = arith.constant 0.000000e+00 : f32
    %7 = vector.broadcast %cst_5 : f32 to vector<8x64xf32>
    %8 = arith.maximumf %6, %7 : vector<8x64xf32>
    %9 = arith.truncf %8 : vector<8x64xf32> to vector<8x64xbf16>
    %c0_6 = arith.constant 0 : index
    %c0_7 = arith.constant 0 : index
    %10 = vector.load %arg4[%c0_6, %c0_7] : memref<64x32xbf16, #tpu.memory_space<vmem>>, vector<64x32xbf16>
    %cst_8 = arith.constant dense<0.000000e+00> : vector<8x32xf32>
    %11 = tpu.matmul %9, %10, %cst_8 {dimension_numbers = #tpu.dot_dimension_numbers<[1], [0], [0], [1], [0, 0, 1, 1], [], []>} : vector<8x64xbf16>, vector<64x32xbf16>, vector<8x32xf32> -> vector<8x32xf32>
    %c0_9 = arith.constant 0 : index
    %c0_10 = arith.constant 0 : index
    %12 = vector.load %arg5[%c0_9, %c0_10] : memref<1x32xf32, #tpu.memory_space<vmem>>, vector<1x32xf32>
    %13 = vector.broadcast %12 : vector<1x32xf32> to vector<8x32xf32>
    %14 = arith.addf %11, %13 : vector<8x32xf32>
    %c0_11 = arith.constant 0 : index
    %c0_12 = arith.constant 0 : index
    %15 = vector.load %arg6[%c0_11, %c0_12] : memref<1x32xf32, #tpu.memory_space<vmem>>, vector<1x32xf32>
    %c0_13 = arith.constant 0 : index
    %c0_14 = arith.constant 0 : index
    %16 = vector.load %arg7[%c0_13, %c0_14] : memref<1x32xf32, #tpu.memory_space<vmem>>, vector<1x32xf32>
    %17 = arith.addf %0, %14 : vector<8x32xf32>
    %cst_15 = arith.constant dense<0.000000e+00> : vector<8xf32>
    %18 = vector.multi_reduction <add>, %17, %cst_15 [1] : vector<8x32xf32> to vector<8xf32>
    %19 = vector.shape_cast %18 : vector<8xf32> to vector<8x1xf32>
    %cst_16 = arith.constant 3.200000e+01 : f32
    %20 = vector.broadcast %cst_16 : f32 to vector<8x1xf32>
    %21 = arith.divf %19, %20 : vector<8x1xf32>
    %22 = vector.broadcast %21 : vector<8x1xf32> to vector<8x32xf32>
    %23 = arith.subf %17, %22 : vector<8x32xf32>
    %24 = arith.mulf %23, %23 : vector<8x32xf32>
    %cst_17 = arith.constant dense<0.000000e+00> : vector<8xf32>
    %25 = vector.multi_reduction <add>, %24, %cst_17 [1] : vector<8x32xf32> to vector<8xf32>
    %26 = vector.shape_cast %25 : vector<8xf32> to vector<8x1xf32>
    %cst_18 = arith.constant 3.200000e+01 : f32
    %27 = vector.broadcast %cst_18 : f32 to vector<8x1xf32>
    %28 = arith.divf %26, %27 : vector<8x1xf32>
    %cst_19 = arith.constant 9.99999974E-6 : f32
    %29 = vector.broadcast %cst_19 : f32 to vector<8x1xf32>
    %30 = arith.addf %28, %29 : vector<8x1xf32>
    %31 = math.rsqrt %30 : vector<8x1xf32>
    %32 = vector.broadcast %31 : vector<8x1xf32> to vector<8x32xf32>
    %33 = arith.mulf %23, %32 : vector<8x32xf32>
    %34 = vector.broadcast %15 : vector<1x32xf32> to vector<8x32xf32>
    %35 = arith.mulf %33, %34 : vector<8x32xf32>
    %36 = vector.broadcast %16 : vector<1x32xf32> to vector<8x32xf32>
    %37 = arith.addf %35, %36 : vector<8x32xf32>
    %c0_20 = arith.constant 0 : index
    %c0_21 = arith.constant 0 : index
    %38 = vector.load %arg8[%c0_20, %c0_21] : memref<8x32xf32, #tpu.memory_space<vmem>>, vector<8x32xf32>
    tpu.vector_store %arg8[%c0_20, %c0_21], %37 {strides = array<i32>} : memref<8x32xf32, #tpu.memory_space<vmem>>, vector<8x32xf32>,
    return
  }
  func.func @transform_0(%arg0: i32) -> (i32, i32) {
    %c0_i32 = arith.constant 0 : i32
    %c0_i32_0 = arith.constant 0 : i32
    return %arg0, %c0_i32 : i32, i32
  }
  func.func @transform_1(%arg0: i32) -> (i32, i32) {
    %c0_i32 = arith.constant 0 : i32
    %c0_i32_0 = arith.constant 0 : i32
    %c0_i32_1 = arith.constant 0 : i32
    return %c0_i32, %c0_i32_0 : i32, i32
  }
  func.func @transform_2(%arg0: i32) -> (i32, i32) {
    %c0_i32 = arith.constant 0 : i32
    %c0_i32_0 = arith.constant 0 : i32
    %c0_i32_1 = arith.constant 0 : i32
    return %c0_i32, %c0_i32_0 : i32, i32
  }
  func.func @transform_3(%arg0: i32) -> (i32, i32) {
    %c0_i32 = arith.constant 0 : i32
    %c0_i32_0 = arith.constant 0 : i32
    %c0_i32_1 = arith.constant 0 : i32
    return %c0_i32, %c0_i32_0 : i32, i32
  }
  func.func @transform_4(%arg0: i32) -> (i32, i32) {
    %c0_i32 = arith.constant 0 : i32
    %c0_i32_0 = arith.constant 0 : i32
    %c0_i32_1 = arith.constant 0 : i32
    return %c0_i32, %c0_i32_0 : i32, i32
  }
  func.func @transform_5(%arg0: i32) -> (i32, i32) {
    %c0_i32 = arith.constant 0 : i32
    %c0_i32_0 = arith.constant 0 : i32
    %c0_i32_1 = arith.constant 0 : i32
    return %c0_i32, %c0_i32_0 : i32, i32
  }
  func.func @transform_6(%arg0: i32) -> (i32, i32) {
    %c0_i32 = arith.constant 0 : i32
    %c0_i32_0 = arith.constant 0 : i32
    %c0_i32_1 = arith.constant 0 : i32
    return %c0_i32, %c0_i32_0 : i32, i32
  }
  func.func @transform_7(%arg0: i32) -> (i32, i32) {
    %c0_i32 = arith.constant 0 : i32
    %c0_i32_0 = arith.constant 0 : i32
    return %arg0, %c0_i32 : i32, i32
  }
}

module attributes {stable_mosaic.version = 11 : i64} {
  func.func @_self_attn_block_kernel(%arg0: i32, %arg1: memref<1x8x32xf32, #tpu.memory_space<vmem>>, %arg2: memref<32x96xbf16, #tpu.memory_space<vmem>>, %arg3: memref<1x96xf32, #tpu.memory_space<vmem>>, %arg4: memref<32x32xbf16, #tpu.memory_space<vmem>>, %arg5: memref<1x32xf32, #tpu.memory_space<vmem>>, %arg6: memref<1x32xf32, #tpu.memory_space<vmem>>, %arg7: memref<1x32xf32, #tpu.memory_space<vmem>>, %arg8: memref<1x8x32xf32, #tpu.memory_space<vmem>>) attributes {dimension_semantics = [#tpu.dimension_semantics<parallel>], iteration_bounds = array<i64: 2>, scalar_prefetch = 0 : i64, scratch_operands = 0 : i64, tpu.core_type = #tpu.core_type<tc>, window_params = [{transform_indices = @transform_0, window_bounds = array<i64: 1, 8, 32>}, {pipeline_mode = #tpu.pipeline_mode<synchronous>, transform_indices = @transform_1, window_bounds = array<i64: 32, 96>}, {pipeline_mode = #tpu.pipeline_mode<synchronous>, transform_indices = @transform_2, window_bounds = array<i64: 1, 96>}, {pipeline_mode = #tpu.pipeline_mode<synchronous>, transform_indices = @transform_3, window_bounds = array<i64: 32, 32>}, {pipeline_mode = #tpu.pipeline_mode<synchronous>, transform_indices = @transform_4, window_bounds = array<i64: 1, 32>}, {pipeline_mode = #tpu.pipeline_mode<synchronous>, transform_indices = @transform_5, window_bounds = array<i64: 1, 32>}, {pipeline_mode = #tpu.pipeline_mode<synchronous>, transform_indices = @transform_6, window_bounds = array<i64: 1, 32>}, {transform_indices = @transform_7, window_bounds = array<i64: 1, 8, 32>}]} {
    %c0 = arith.constant 0 : index
    %c0_0 = arith.constant 0 : index
    %c0_1 = arith.constant 0 : index
    %0 = vector.load %arg1[%c0, %c0_0, %c0_1] : memref<1x8x32xf32, #tpu.memory_space<vmem>>, vector<1x8x32xf32>
    %1 = vector.shape_cast %0 : vector<1x8x32xf32> to vector<8x32xf32>
    %2 = arith.truncf %1 : vector<8x32xf32> to vector<8x32xbf16>
    %c0_2 = arith.constant 0 : index
    %c0_3 = arith.constant 0 : index
    %3 = vector.load %arg2[%c0_2, %c0_3] : memref<32x96xbf16, #tpu.memory_space<vmem>>, vector<32x96xbf16>
    %cst = arith.constant dense<0.000000e+00> : vector<8x96xf32>
    %4 = tpu.matmul %2, %3, %cst {dimension_numbers = #tpu.dot_dimension_numbers<[1], [0], [0], [1], [0, 0, 1, 1], [], []>} : vector<8x32xbf16>, vector<32x96xbf16>, vector<8x96xf32> -> vector<8x96xf32>
    %c0_4 = arith.constant 0 : index
    %c0_5 = arith.constant 0 : index
    %5 = vector.load %arg3[%c0_4, %c0_5] : memref<1x96xf32, #tpu.memory_space<vmem>>, vector<1x96xf32>
    %6 = vector.broadcast %5 : vector<1x96xf32> to vector<8x96xf32>
    %7 = arith.addf %4, %6 : vector<8x96xf32>
    %8 = vector.extract_strided_slice %7 {offsets = [0, 0], sizes = [8, 32], strides = [1, 1]} : vector<8x96xf32> to vector<8x32xf32>
    %9 = vector.extract_strided_slice %7 {offsets = [0, 32], sizes = [8, 32], strides = [1, 1]} : vector<8x96xf32> to vector<8x32xf32>
    %10 = vector.extract_strided_slice %7 {offsets = [0, 64], sizes = [8, 32], strides = [1, 1]} : vector<8x96xf32> to vector<8x32xf32>
    %cst_6 = arith.constant 0.353553385 : f32
    %11 = vector.broadcast %cst_6 : f32 to vector<8x32xf32>
    %12 = arith.mulf %8, %11 : vector<8x32xf32>
    %13 = vector.extract_strided_slice %12 {offsets = [0, 0], sizes = [8, 8], strides = [1, 1]} : vector<8x32xf32> to vector<8x8xf32>
    %14 = vector.extract_strided_slice %12 {offsets = [0, 8], sizes = [8, 8], strides = [1, 1]} : vector<8x32xf32> to vector<8x8xf32>
    %15 = vector.extract_strided_slice %12 {offsets = [0, 16], sizes = [8, 8], strides = [1, 1]} : vector<8x32xf32> to vector<8x8xf32>
    %16 = vector.extract_strided_slice %12 {offsets = [0, 24], sizes = [8, 8], strides = [1, 1]} : vector<8x32xf32> to vector<8x8xf32>
    %17 = vector.shape_cast %13 : vector<8x8xf32> to vector<1x8x8xf32>
    %18 = vector.shape_cast %14 : vector<8x8xf32> to vector<1x8x8xf32>
    %19 = vector.shape_cast %15 : vector<8x8xf32> to vector<1x8x8xf32>
    %20 = vector.shape_cast %16 : vector<8x8xf32> to vector<1x8x8xf32>
    %21 = tpu.concatenate %17, %18, %19, %20 in 0 : vector<1x8x8xf32>, vector<1x8x8xf32>, vector<1x8x8xf32>, vector<1x8x8xf32> -> vector<4x8x8xf32>
    %22 = arith.truncf %21 : vector<4x8x8xf32> to vector<4x8x8xbf16>
    %23 = vector.extract_strided_slice %9 {offsets = [0, 0], sizes = [8, 8], strides = [1, 1]} : vector<8x32xf32> to vector<8x8xf32>
    %24 = vector.extract_strided_slice %9 {offsets = [0, 8], sizes = [8, 8], strides = [1, 1]} : vector<8x32xf32> to vector<8x8xf32>
    %25 = vector.extract_strided_slice %9 {offsets = [0, 16], sizes = [8, 8], strides = [1, 1]} : vector<8x32xf32> to vector<8x8xf32>
    %26 = vector.extract_strided_slice %9 {offsets = [0, 24], sizes = [8, 8], strides = [1, 1]} : vector<8x32xf32> to vector<8x8xf32>
    %27 = vector.shape_cast %23 : vector<8x8xf32> to vector<1x8x8xf32>
    %28 = vector.shape_cast %24 : vector<8x8xf32> to vector<1x8x8xf32>
    %29 = vector.shape_cast %25 : vector<8x8xf32> to vector<1x8x8xf32>
    %30 = vector.shape_cast %26 : vector<8x8xf32> to vector<1x8x8xf32>
    %31 = tpu.concatenate %27, %28, %29, %30 in 0 : vector<1x8x8xf32>, vector<1x8x8xf32>, vector<1x8x8xf32>, vector<1x8x8xf32> -> vector<4x8x8xf32>
    %32 = arith.truncf %31 : vector<4x8x8xf32> to vector<4x8x8xbf16>
    %33 = vector.extract_strided_slice %10 {offsets = [0, 0], sizes = [8, 8], strides = [1, 1]} : vector<8x32xf32> to vector<8x8xf32>
    %34 = vector.extract_strided_slice %10 {offsets = [0, 8], sizes = [8, 8], strides = [1, 1]} : vector<8x32xf32> to vector<8x8xf32>
    %35 = vector.extract_strided_slice %10 {offsets = [0, 16], sizes = [8, 8], strides = [1, 1]} : vector<8x32xf32> to vector<8x8xf32>
    %36 = vector.extract_strided_slice %10 {offsets = [0, 24], sizes = [8, 8], strides = [1, 1]} : vector<8x32xf32> to vector<8x8xf32>
    %37 = vector.shape_cast %33 : vector<8x8xf32> to vector<1x8x8xf32>
    %38 = vector.shape_cast %34 : vector<8x8xf32> to vector<1x8x8xf32>
    %39 = vector.shape_cast %35 : vector<8x8xf32> to vector<1x8x8xf32>
    %40 = vector.shape_cast %36 : vector<8x8xf32> to vector<1x8x8xf32>
    %41 = tpu.concatenate %37, %38, %39, %40 in 0 : vector<1x8x8xf32>, vector<1x8x8xf32>, vector<1x8x8xf32>, vector<1x8x8xf32> -> vector<4x8x8xf32>
    %42 = arith.truncf %41 : vector<4x8x8xf32> to vector<4x8x8xbf16>
    "tpu.trace_start"() <{level = 10 : i32, message = "hld,hsd->hls"}> : () -> ()
    %cst_7 = arith.constant dense<0.000000e+00> : vector<4x8x8xf32>
    %43 = tpu.matmul %22, %32, %cst_7 {dimension_numbers = #tpu.dot_dimension_numbers<[2], [2], [1], [1], [0, 0, 0, 1, 1, 1], [0], [0]>} : vector<4x8x8xbf16>, vector<4x8x8xbf16>, vector<4x8x8xf32> -> vector<4x8x8xf32>
    "tpu.trace_stop"() : () -> ()
    %cst_8 = arith.constant dense<0xFF800000> : vector<4x8xf32>
    %44 = vector.multi_reduction <maximumf>, %43, %cst_8 [2] : vector<4x8x8xf32> to vector<4x8xf32>
    %45 = vector.shape_cast %44 : vector<4x8xf32> to vector<4x8x1xf32>
    %46 = vector.broadcast %45 : vector<4x8x1xf32> to vector<4x8x8xf32>
    %47 = arith.subf %43, %46 : vector<4x8x8xf32>
    %48 = math.exp %47 : vector<4x8x8xf32>
    %cst_9 = arith.constant dense<0.000000e+00> : vector<4x8xf32>
    %49 = vector.multi_reduction <add>, %48, %cst_9 [2] : vector<4x8x8xf32> to vector<4x8xf32>
    %50 = vector.shape_cast %49 : vector<4x8xf32> to vector<4x8x1xf32>
    %51 = tpu.reciprocal %50 {approx = true} : vector<4x8x1xf32> -> vector<4x8x1xf32>
    %52 = vector.broadcast %51 : vector<4x8x1xf32> to vector<4x8x8xf32>
    %53 = arith.mulf %48, %52 : vector<4x8x8xf32>
    %54 = arith.truncf %53 : vector<4x8x8xf32> to vector<4x8x8xbf16>
    "tpu.trace_start"() <{level = 10 : i32, message = "hls,hsd->hld"}> : () -> ()
    %cst_10 = arith.constant dense<0.000000e+00> : vector<4x8x8xf32>
    %55 = tpu.matmul %54, %42, %cst_10 {dimension_numbers = #tpu.dot_dimension_numbers<[2], [1], [1], [2], [0, 0, 0, 1, 1, 2], [0], [0]>} : vector<4x8x8xbf16>, vector<4x8x8xbf16>, vector<4x8x8xf32> -> vector<4x8x8xf32>
    "tpu.trace_stop"() : () -> ()
    %56 = vector.extract_strided_slice %55 {offsets = [0, 0, 0], sizes = [1, 8, 8], strides = [1, 1, 1]} : vector<4x8x8xf32> to vector<1x8x8xf32>
    %57 = vector.shape_cast %56 : vector<1x8x8xf32> to vector<8x8xf32>
    %58 = vector.extract_strided_slice %55 {offsets = [1, 0, 0], sizes = [1, 8, 8], strides = [1, 1, 1]} : vector<4x8x8xf32> to vector<1x8x8xf32>
    %59 = vector.shape_cast %58 : vector<1x8x8xf32> to vector<8x8xf32>
    %60 = vector.extract_strided_slice %55 {offsets = [2, 0, 0], sizes = [1, 8, 8], strides = [1, 1, 1]} : vector<4x8x8xf32> to vector<1x8x8xf32>
    %61 = vector.shape_cast %60 : vector<1x8x8xf32> to vector<8x8xf32>
    %62 = vector.extract_strided_slice %55 {offsets = [3, 0, 0], sizes = [1, 8, 8], strides = [1, 1, 1]} : vector<4x8x8xf32> to vector<1x8x8xf32>
    %63 = vector.shape_cast %62 : vector<1x8x8xf32> to vector<8x8xf32>
    %64 = tpu.concatenate %57, %59, %61, %63 in 1 : vector<8x8xf32>, vector<8x8xf32>, vector<8x8xf32>, vector<8x8xf32> -> vector<8x32xf32>
    %65 = arith.truncf %64 : vector<8x32xf32> to vector<8x32xbf16>
    %c0_11 = arith.constant 0 : index
    %c0_12 = arith.constant 0 : index
    %66 = vector.load %arg4[%c0_11, %c0_12] : memref<32x32xbf16, #tpu.memory_space<vmem>>, vector<32x32xbf16>
    %cst_13 = arith.constant dense<0.000000e+00> : vector<8x32xf32>
    %67 = tpu.matmul %65, %66, %cst_13 {dimension_numbers = #tpu.dot_dimension_numbers<[1], [0], [0], [1], [0, 0, 1, 1], [], []>} : vector<8x32xbf16>, vector<32x32xbf16>, vector<8x32xf32> -> vector<8x32xf32>
    %c0_14 = arith.constant 0 : index
    %c0_15 = arith.constant 0 : index
    %68 = vector.load %arg5[%c0_14, %c0_15] : memref<1x32xf32, #tpu.memory_space<vmem>>, vector<1x32xf32>
    %69 = vector.broadcast %68 : vector<1x32xf32> to vector<8x32xf32>
    %70 = arith.addf %67, %69 : vector<8x32xf32>
    %c0_16 = arith.constant 0 : index
    %c0_17 = arith.constant 0 : index
    %71 = vector.load %arg6[%c0_16, %c0_17] : memref<1x32xf32, #tpu.memory_space<vmem>>, vector<1x32xf32>
    %c0_18 = arith.constant 0 : index
    %c0_19 = arith.constant 0 : index
    %72 = vector.load %arg7[%c0_18, %c0_19] : memref<1x32xf32, #tpu.memory_space<vmem>>, vector<1x32xf32>
    %73 = arith.addf %1, %70 : vector<8x32xf32>
    %cst_20 = arith.constant dense<0.000000e+00> : vector<8xf32>
    %74 = vector.multi_reduction <add>, %73, %cst_20 [1] : vector<8x32xf32> to vector<8xf32>
    %75 = vector.shape_cast %74 : vector<8xf32> to vector<8x1xf32>
    %cst_21 = arith.constant 3.200000e+01 : f32
    %76 = vector.broadcast %cst_21 : f32 to vector<8x1xf32>
    %77 = arith.divf %75, %76 : vector<8x1xf32>
    %78 = vector.broadcast %77 : vector<8x1xf32> to vector<8x32xf32>
    %79 = arith.subf %73, %78 : vector<8x32xf32>
    %80 = arith.mulf %79, %79 : vector<8x32xf32>
    %cst_22 = arith.constant dense<0.000000e+00> : vector<8xf32>
    %81 = vector.multi_reduction <add>, %80, %cst_22 [1] : vector<8x32xf32> to vector<8xf32>
    %82 = vector.shape_cast %81 : vector<8xf32> to vector<8x1xf32>
    %cst_23 = arith.constant 3.200000e+01 : f32
    %83 = vector.broadcast %cst_23 : f32 to vector<8x1xf32>
    %84 = arith.divf %82, %83 : vector<8x1xf32>
    %cst_24 = arith.constant 9.99999974E-6 : f32
    %85 = vector.broadcast %cst_24 : f32 to vector<8x1xf32>
    %86 = arith.addf %84, %85 : vector<8x1xf32>
    %87 = math.rsqrt %86 : vector<8x1xf32>
    %88 = vector.broadcast %87 : vector<8x1xf32> to vector<8x32xf32>
    %89 = arith.mulf %79, %88 : vector<8x32xf32>
    %90 = vector.broadcast %71 : vector<1x32xf32> to vector<8x32xf32>
    %91 = arith.mulf %89, %90 : vector<8x32xf32>
    %92 = vector.broadcast %72 : vector<1x32xf32> to vector<8x32xf32>
    %93 = arith.addf %91, %92 : vector<8x32xf32>
    %c0_25 = arith.constant 0 : index
    %c0_26 = arith.constant 0 : index
    %c0_27 = arith.constant 0 : index
    %94 = vector.load %arg8[%c0_25, %c0_26, %c0_27] : memref<1x8x32xf32, #tpu.memory_space<vmem>>, vector<1x8x32xf32>
    %95 = vector.shape_cast %94 : vector<1x8x32xf32> to vector<8x32xf32>
    %96 = vector.shape_cast %93 : vector<8x32xf32> to vector<1x8x32xf32>
    tpu.vector_store %arg8[%c0_25, %c0_26, %c0_27], %96 {strides = array<i32>} : memref<1x8x32xf32, #tpu.memory_space<vmem>>, vector<1x8x32xf32>,
    return
  }
  func.func @transform_0(%arg0: i32) -> (i32, i32, i32) {
    %c0_i32 = arith.constant 0 : i32
    %c0_i32_0 = arith.constant 0 : i32
    %c0_i32_1 = arith.constant 0 : i32
    return %arg0, %c0_i32, %c0_i32_0 : i32, i32, i32
  }
  func.func @transform_1(%arg0: i32) -> (i32, i32) {
    %c0_i32 = arith.constant 0 : i32
    %c0_i32_0 = arith.constant 0 : i32
    %c0_i32_1 = arith.constant 0 : i32
    return %c0_i32, %c0_i32_0 : i32, i32
  }
  func.func @transform_2(%arg0: i32) -> (i32, i32) {
    %c0_i32 = arith.constant 0 : i32
    %c0_i32_0 = arith.constant 0 : i32
    %c0_i32_1 = arith.constant 0 : i32
    return %c0_i32, %c0_i32_0 : i32, i32
  }
  func.func @transform_3(%arg0: i32) -> (i32, i32) {
    %c0_i32 = arith.constant 0 : i32
    %c0_i32_0 = arith.constant 0 : i32
    %c0_i32_1 = arith.constant 0 : i32
    return %c0_i32, %c0_i32_0 : i32, i32
  }
  func.func @transform_4(%arg0: i32) -> (i32, i32) {
    %c0_i32 = arith.constant 0 : i32
    %c0_i32_0 = arith.constant 0 : i32
    %c0_i32_1 = arith.constant 0 : i32
    return %c0_i32, %c0_i32_0 : i32, i32
  }
  func.func @transform_5(%arg0: i32) -> (i32, i32) {
    %c0_i32 = arith.constant 0 : i32
    %c0_i32_0 = arith.constant 0 : i32
    %c0_i32_1 = arith.constant 0 : i32
    return %c0_i32, %c0_i32_0 : i32, i32
  }
  func.func @transform_6(%arg0: i32) -> (i32, i32) {
    %c0_i32 = arith.constant 0 : i32
    %c0_i32_0 = arith.constant 0 : i32
    %c0_i32_1 = arith.constant 0 : i32
    return %c0_i32, %c0_i32_0 : i32, i32
  }
  func.func @transform_7(%arg0: i32) -> (i32, i32, i32) {
    %c0_i32 = arith.constant 0 : i32
    %c0_i32_0 = arith.constant 0 : i32
    %c0_i32_1 = arith.constant 0 : i32
    return %arg0, %c0_i32, %c0_i32_0 : i32, i32, i32
  }
}

</mosaic_0001>

<llo_original>
// kernel: _lambda_.3
$region0: #{_lambda_.3}
  #allocation0 [shape = 'u32[]', space=smem, size = 0x4, offset = 0x4, fixed_abs, tag = 'smem constant byte address 0x4 - core index']
  #allocation1 [shape = 'u32[144,128]{1,0:T(1,128)}', space=vmem, size = 0x12000, scoped, tag = 'internal scratch']
  %s0 = inlined_call_operand.vmem [shape: f32[16,32], index: 0, kind: input, shape index: {}, may-alias: {0,7}]
  %s1 = inlined_call_operand.vmem [shape: bf16[32,64], index: 1, kind: input, shape index: {}]
  %s2 = inlined_call_operand.vmem [shape: f32[1,64], index: 2, kind: input, shape index: {}]
  %s3 = inlined_call_operand.vmem [shape: bf16[64,32], index: 3, kind: input, shape index: {}]
  %s4 = inlined_call_operand.vmem [shape: f32[1,32], index: 4, kind: input, shape index: {}]
  %s5 = inlined_call_operand.vmem [shape: f32[1,32], index: 5, kind: input, shape index: {}]
  %s6 = inlined_call_operand.vmem [shape: f32[1,32], index: 6, kind: input, shape index: {}]
  %s7 = inlined_call_operand.vmem [shape: f32[16,32], index: 7, kind: output, shape index: {}, may-alias: {0,7}]
  %s8 = sld [smem:[#allocation0]]
  $region61: #{_lambda_.3} parent=0
    _
  %s10 = ssub.s32 1, %s8
  %s11 = scalar_select 0, %s10, %s8
  loop: start=0, step=1, limit=4
  $region2: #{_lambda_.3} parent=0 // loop_pre_header
    _
  $region3: #{_lambda_.3} parent=0 // loop_header
    %s13 = sphi 0, %s17
    %p14 = scmp.ge.s32.totalorder %s13, 4
    %s23 = sphi 0, %s25
    %s26 = sphi 0, %s23
    %s27 = sphi 0, %s26
    %s43 = sphi 0, %s27
    %s47 = sphi 0, %s47
    %s49 = sphi 0, %s47
    %s50 = sphi 0, %s49
    %s64 = sphi 0, %s50
    %s68 = sphi 0, %s68
    %s70 = sphi 0, %s68
    %s71 = sphi 0, %s70
    %s85 = sphi 0, %s71
    %s89 = sphi 0, %s89
    %s91 = sphi 0, %s89
    %s92 = sphi 0, %s91
    %s106 = sphi 0, %s92
    %s110 = sphi 0, %s110
    %s112 = sphi 0, %s110
    %s113 = sphi 0, %s112
    %s127 = sphi 0, %s113
    %s131 = sphi 0, %s131
    %s133 = sphi 0, %s131
    %s134 = sphi 0, %s133
    %s148 = sphi 0, %s134
    %s152 = sphi 0, %s152
    %s154 = sphi 0, %s152
    %s155 = sphi 0, %s154
    %s169 = sphi 0, %s155
    %s175 = sphi 0, %s177
    %s178 = sphi 0, %s175
    %s179 = sphi 0, %s178
    %s195 = sphi 0, %s179
  $region4: #{_lambda_.3} parent=0 // loop_header_branch
    %16 = sbr.rel (%p14) target = $region8
  $region5: #{_lambda_.3} parent=0 // loop_body
    %s18 = ssub.s32 %s13, 1
    %s19 = ssub.s32 %s13, 2
    %s20 = sadd.s32 %s13, 1
    %s21 = ssub.s32 %s13, %s20
    %p22 = scmp.eq.s32.totalorder %s21, 0
    %s24 = sadd.s32 %s23, 1
    %s25 = scalar_select %p22, %s23, %s24
    %p28 = pneg %p22
    %p29 = scmp.eq.s32.totalorder %s13, 1
    %p30 = por %p28, %p29
    %p31 = scmp.ne.s32.totalorder %s23, %s26
    %p32 = scmp.eq.s32.totalorder %s13, 0
    %p33 = por %p31, %p32
    %p34 = scmp.ne.s32.totalorder %s23, %s26
    %p35 = scmp.eq.s32.totalorder %s18, 1
    %p36 = por %p34, %p35
    %p37 = scmp.ne.s32.totalorder %s26, %s27
    %p38 = scmp.eq.s32.totalorder %s18, 0
    %p39 = por %p37, %p38
    %p40 = scmp.ne.s32.totalorder %s26, %s27
    %p41 = scmp.eq.s32.totalorder %s19, 1
    %p42 = por %p40, %p41
    %p44 = scmp.ne.s32.totalorder %s27, %s43
    %p45 = scmp.eq.s32.totalorder %s19, 0
    %p46 = por %p44, %p45
    %s48 = sadd.s32 %s47, 1
    %p51 = scmp.eq.s32.totalorder %s13, 1
    %p52 = scmp.ne.s32.totalorder %s47, %s49
    %p53 = scmp.eq.s32.totalorder %s13, 0
    %p54 = por %p52, %p53
    %p55 = scmp.ne.s32.totalorder %s47, %s49
    %p56 = scmp.eq.s32.totalorder %s18, 1
    %p57 = por %p55, %p56
    %p58 = scmp.ne.s32.totalorder %s49, %s50
    %p59 = scmp.eq.s32.totalorder %s18, 0
    %p60 = por %p58, %p59
    %p61 = scmp.ne.s32.totalorder %s49, %s50
    %p62 = scmp.eq.s32.totalorder %s19, 1
    %p63 = por %p61, %p62
    %p65 = scmp.ne.s32.totalorder %s50, %s64
    %p66 = scmp.eq.s32.totalorder %s19, 0
    %p67 = por %p65, %p66
    %s69 = sadd.s32 %s68, 1
    %p72 = scmp.eq.s32.totalorder %s13, 1
    %p73 = scmp.ne.s32.totalorder %s68, %s70
    %p74 = scmp.eq.s32.totalorder %s13, 0
    %p75 = por %p73, %p74
    %p76 = scmp.ne.s32.totalorder %s68, %s70
    %p77 = scmp.eq.s32.totalorder %s18, 1
    %p78 = por %p76, %p77
    %p79 = scmp.ne.s32.totalorder %s70, %s71
    %p80 = scmp.eq.s32.totalorder %s18, 0
    %p81 = por %p79, %p80
    %p82 = scmp.ne.s32.totalorder %s70, %s71
    %p83 = scmp.eq.s32.totalorder %s19, 1
    %p84 = por %p82, %p83
    %p86 = scmp.ne.s32.totalorder %s71, %s85
    %p87 = scmp.eq.s32.totalorder %s19, 0
    %p88 = por %p86, %p87
    %s90 = sadd.s32 %s89, 1
    %p93 = scmp.eq.s32.totalorder %s13, 1
    %p94 = scmp.ne.s32.totalorder %s89, %s91
    %p95 = scmp.eq.s32.totalorder %s13, 0
    %p96 = por %p94, %p95
    %p97 = scmp.ne.s32.totalorder %s89, %s91
    %p98 = scmp.eq.s32.totalorder %s18, 1
    %p99 = por %p97, %p98
    %p100 = scmp.ne.s32.totalorder %s91, %s92
    %p101 = scmp.eq.s32.totalorder %s18, 0
    %p102 = por %p100, %p101
    %p103 = scmp.ne.s32.totalorder %s91, %s92
    %p104 = scmp.eq.s32.totalorder %s19, 1
    %p105 = por %p103, %p104
    %p107 = scmp.ne.s32.totalorder %s92, %s106
    %p108 = scmp.eq.s32.totalorder %s19, 0
    %p109 = por %p107, %p108
    %s111 = sadd.s32 %s110, 1
    %p114 = scmp.eq.s32.totalorder %s13, 1
    %p115 = scmp.ne.s32.totalorder %s110, %s112
    %p116 = scmp.eq.s32.totalorder %s13, 0
    %p117 = por %p115, %p116
    %p118 = scmp.ne.s32.totalorder %s110, %s112
    %p119 = scmp.eq.s32.totalorder %s18, 1
    %p120 = por %p118, %p119
    %p121 = scmp.ne.s32.totalorder %s112, %s113
    %p122 = scmp.eq.s32.totalorder %s18, 0
    %p123 = por %p121, %p122
    %p124 = scmp.ne.s32.totalorder %s112, %s113
    %p125 = scmp.eq.s32.totalorder %s19, 1
    %p126 = por %p124, %p125
    %p128 = scmp.ne.s32.totalorder %s113, %s127
    %p129 = scmp.eq.s32.totalorder %s19, 0
    %p130 = por %p128, %p129
    %s132 = sadd.s32 %s131, 1
    %p135 = scmp.eq.s32.totalorder %s13, 1
    %p136 = scmp.ne.s32.totalorder %s131, %s133
    %p137 = scmp.eq.s32.totalorder %s13, 0
    %p138 = por %p136, %p137
    %p139 = scmp.ne.s32.totalorder %s131, %s133
    %p140 = scmp.eq.s32.totalorder %s18, 1
    %p141 = por %p139, %p140
    %p142 = scmp.ne.s32.totalorder %s133, %s134
    %p143 = scmp.eq.s32.totalorder %s18, 0
    %p144 = por %p142, %p143
    %p145 = scmp.ne.s32.totalorder %s133, %s134
    %p146 = scmp.eq.s32.totalorder %s19, 1
    %p147 = por %p145, %p146
    %p149 = scmp.ne.s32.totalorder %s134, %s148
    %p150 = scmp.eq.s32.totalorder %s19, 0
    %p151 = por %p149, %p150
    %s153 = sadd.s32 %s152, 1
    %p156 = scmp.eq.s32.totalorder %s13, 1
    %p157 = scmp.ne.s32.totalorder %s152, %s154
    %p158 = scmp.eq.s32.totalorder %s13, 0
    %p159 = por %p157, %p158
    %p160 = scmp.ne.s32.totalorder %s152, %s154
    %p161 = scmp.eq.s32.totalorder %s18, 1
    %p162 = por %p160, %p161
    %p163 = scmp.ne.s32.totalorder %s154, %s155
    %p164 = scmp.eq.s32.totalorder %s18, 0
    %p165 = por %p163, %p164
    %p166 = scmp.ne.s32.totalorder %s154, %s155
    %p167 = scmp.eq.s32.totalorder %s19, 1
    %p168 = por %p166, %p167
    %p170 = scmp.ne.s32.totalorder %s155, %s169
    %p171 = scmp.eq.s32.totalorder %s19, 0
    %p172 = por %p170, %p171
    %s173 = ssub.s32 %s13, %s20
    %p174 = scmp.eq.s32.totalorder %s173, 0
    %s176 = sadd.s32 %s175, 1
    %s177 = scalar_select %p174, %s175, %s176
    %p180 = pneg %p174
    %p181 = scmp.eq.s32.totalorder %s13, 1
    %p182 = por %p180, %p181
    %p183 = scmp.ne.s32.totalorder %s175, %s178
    %p184 = scmp.eq.s32.totalorder %s13, 0
    %p185 = por %p183, %p184
    %p186 = scmp.ne.s32.totalorder %s175, %s178
    %p187 = scmp.eq.s32.totalorder %s18, 1
    %p188 = por %p186, %p187
    %p189 = scmp.ne.s32.totalorder %s178, %s179
    %p190 = scmp.eq.s32.totalorder %s18, 0
    %p191 = por %p189, %p190
    %p192 = scmp.ne.s32.totalorder %s178, %s179
    %p193 = scmp.eq.s32.totalorder %s19, 1
    %p194 = por %p192, %p193
    %p196 = scmp.ne.s32.totalorder %s179, %s195
    %p197 = scmp.eq.s32.totalorder %s19, 0
    %p198 = por %p196, %p197
    %p199 = scmp.le.s32.totalorder 1, %s13
    %p200 = scmp.lt.s32.totalorder %s13, 3
    %p201 = pnand %p199, %p200
    %p202 = pneg %p201
    // Predicated region
    $region9: #{_lambda_.3} parent=5 // pred_check
      _
    $region10: #{_lambda_.3} parent=5 // pred_check_branch
      %204 = sbr.rel (%p201) target = $region12
    $region11: #{_lambda_.3} parent=5 // pred_region
      %s205 = ssub.s32 %s13, 1
      // Predicated region
      $region13: #{_lambda_.3} parent=11 // pred_check
        %p206 = pneg %p60
      $region14: #{_lambda_.3} parent=11 // pred_check_branch
        %208 = sbr.rel (%p206) target = $region16
      $region15: #{_lambda_.3} parent=11 // pred_region
        _
      $region16: #{_lambda_.3} parent=11 // pred_fallthru
        _
      // Predicated region
      $region17: #{_lambda_.3} parent=11 // pred_check
        %p209 = pneg %p81
      $region18: #{_lambda_.3} parent=11 // pred_check_branch
        %211 = sbr.rel (%p209) target = $region20
      $region19: #{_lambda_.3} parent=11 // pred_region
        _
      $region20: #{_lambda_.3} parent=11 // pred_fallthru
        _
      // Predicated region
      $region21: #{_lambda_.3} parent=11 // pred_check
        %p212 = pneg %p102
      $region22: #{_lambda_.3} parent=11 // pred_check_branch
        %214 = sbr.rel (%p212) target = $region24
      $region23: #{_lambda_.3} parent=11 // pred_region
        _
      $region24: #{_lambda_.3} parent=11 // pred_fallthru
        _
      // Predicated region
      $region25: #{_lambda_.3} parent=11 // pred_check
        %p215 = pneg %p123
      $region26: #{_lambda_.3} parent=11 // pred_check_branch
        %217 = sbr.rel (%p215) target = $region28
      $region27: #{_lambda_.3} parent=11 // pred_region
        _
      $region28: #{_lambda_.3} parent=11 // pred_fallthru
        _
      // Predicated region
      $region29: #{_lambda_.3} parent=11 // pred_check
        %p218 = pneg %p144
      $region30: #{_lambda_.3} parent=11 // pred_check_branch
        %220 = sbr.rel (%p218) target = $region32
      $region31: #{_lambda_.3} parent=11 // pred_region
        _
      $region32: #{_lambda_.3} parent=11 // pred_fallthru
        _
      // Predicated region
      $region33: #{_lambda_.3} parent=11 // pred_check
        %p221 = pneg %p165
      $region34: #{_lambda_.3} parent=11 // pred_check_branch
        %223 = sbr.rel (%p221) target = $region36
      $region35: #{_lambda_.3} parent=11 // pred_region
        _
      $region36: #{_lambda_.3} parent=11 // pred_fallthru
        _
    $region12: #{_lambda_.3} parent=5 // pred_fallthru
      _
    %p224 = scmp.lt.s32.totalorder %s13, 2
    // Predicated region
    $region37: #{_lambda_.3} parent=5 // pred_check
      %p225 = pneg %p224
    $region38: #{_lambda_.3} parent=5 // pred_check_branch
      %227 = sbr.rel (%p225) target = $region40
    $region39: #{_lambda_.3} parent=5 // pred_region
      // Predicated region
      $region41: #{_lambda_.3} parent=39 // pred_check
        %p228 = pneg %p33
      $region42: #{_lambda_.3} parent=39 // pred_check_branch
        %230 = sbr.rel (%p228) target = $region44
      $region43: #{_lambda_.3} parent=39 // pred_region
        %p231 = scmp.lt.s32.totalorder %s13, 1
        %s232 = scalar_select %p231, %s13, 1
        %s233 = smul.addr %s232, 8
        %s234 = scalar_lea.vmem %s0, %s233
      $region44: #{_lambda_.3} parent=39 // pred_fallthru
        _
    $region40: #{_lambda_.3} parent=5 // pred_fallthru
      _
    %p235 = scmp.le.s32.totalorder 1, %s13
    %p236 = scmp.lt.s32.totalorder %s13, 3
    %p237 = pnand %p235, %p236
    %p238 = pneg %p237
    // Predicated region
    $region45: #{_lambda_.3} parent=5 // pred_check
      _
    $region46: #{_lambda_.3} parent=5 // pred_check_branch
      %240 = sbr.rel (%p237) target = $region48
    $region47: #{_lambda_.3} parent=5 // pred_region
      %s241 = ssub.s32 %s13, 1
      %p242 = scmp.lt.s32.totalorder %s18, 1
      %s243 = scalar_select %p242, %s18, 1
      %s244 = smul.addr %s243, 8
      %s245 = scalar_lea.vmem %s0, %s244
      %p246 = pneg %p39
      %p247 = pneg %p36
      %p248 = pneg %p60
      %p249 = pneg %p57
      %p250 = pneg %p81
      %p251 = pneg %p78
      %p252 = pneg %p102
      %p253 = pneg %p99
      %p254 = pneg %p123
      %p255 = pneg %p120
      %p256 = pneg %p144
      %p257 = pneg %p141
      %p258 = pneg %p165
      %p259 = pneg %p162
      %p260 = pneg %p191
      %p261 = pneg %p188
      %p262 = scmp.lt.s32.totalorder %s18, 1
      %s263 = scalar_select %p262, %s18, 1
      %s264 = smul.addr %s263, 8
      %s265 = scalar_lea.vmem %s7, %s264
      %p266 = scmp.lt.s32.totalorder %s18, 1
      %s267 = scalar_select %p266, %s18, 1
      %s268 = smul.addr %s267, 8
      %s269 = scalar_lea.vmem %s0, %s268
      %p270 = scmp.lt.s32.totalorder %s18, 1
      %s271 = scalar_select %p270, %s18, 1
      %s272 = smul.addr %s271, 8
      %s273 = scalar_lea.vmem %s7, %s272
      %v275 = vld [vmem:[%s269] sm:$0xff]
      %v276 = vpack.c.bf16 %v275, %v275
      %v277 = vld [vmem:[%s1] sm:$0xf]
      %v278 = vld [vmem:[%s1 + $0x4] sm:$0xf]
      %v279 = vld [vmem:[%s1 + $0x8] sm:$0xf]
      %v280 = vld [vmem:[%s1 + $0xc] sm:$0xf]
      %v281 = vld [vmem:[%s2] sm:$0x1]
      %v283 = vlaneseq
      %v284 = vshrl.u32 %v283, 7
      %v285 = vsub.s32 0, %v284
      %v286 = vrot.slane %v281, %v285
      %v292 = vunpack.c.l.b16 %v277
      %v293 = vunpack.c.l.b16 %v278
      %v294 = vunpack.c.l.b16 %v279
      %v295 = vunpack.c.l.b16 %v280
      %v296 = vpack.c.b16 %v293, %v292
      %v297 = vpack.c.b16 %v295, %v294
      %vm300 = vcmask 261120
      %v302 = vsel %vm300, %v276, 0
      %304 = vmatprep.subr.bf16.mxu0 0
      %305 = vmatpush1.bf16.msra.mxu0 0
      %306 = vmatprep.subr.bf16.mxu0 0
      %307 = vmatpush1.bf16.msra.mxu0 0
      %308 = vmatprep.subr.bf16.mxu0 0
      %309 = vmatpush1.bf16.msra.mxu0 0
      %310 = vmatprep.subr.bf16.mxu0 0
      %311 = vmatpush1.bf16.msra.mxu0 0
      %312 = vmatprep.subr.bf16.mxu0 0
      %313 = vmatpush1.bf16.msra.mxu0 0
      %314 = vmatprep.subr.bf16.mxu0 0
      %315 = vmatpush1.bf16.msra.mxu0 0
      %316 = vmatprep.subr.bf16.mxu0 0
      %317 = vmatpush1.bf16.msra.mxu0 %v297
      %318 = vmatprep.subr.bf16.mxu0 0
      %319 = vmatpush1.bf16.msra.mxu0 %v296
      %320 = vmatprep.subr.bf16.mxu0 0
      %321 = vmatpush2.bf16.msra.mxu0 0
      %322 = vmatprep.subr.bf16.mxu0 0
      %323 = vmatpush2.bf16.msra.mxu0 0
      %324 = vmatprep.subr.bf16.mxu0 0
      %325 = vmatpush2.bf16.msra.mxu0 0
      %326 = vmatprep.subr.bf16.mxu0 0
      %327 = vmatpush2.bf16.msra.mxu0 0
      %328 = vmatprep.subr.bf16.mxu0 0
      %329 = vmatpush2.bf16.msra.mxu0 0
      %330 = vmatprep.subr.bf16.mxu0 0
      %331 = vmatpush2.bf16.msra.mxu0 0
      %332 = vmatprep.subr.bf16.mxu0 0
      %333 = vmatpush2.bf16.msra.mxu0 0
      %334 = vmatprep.subr.bf16.mxu0 0
      %335 = vmatpush2.bf16.msra.mxu0 0
      %336 = vmatprep.mubr.bf16.mxu0 0
      %337 = vmatmul.mubr.bf16.gmra.mxu0 %v302
      %v338 = vpop.f32.mrf.mxu0
      %v339 = vadd.f32 %v286, %v338
      %v340 = vpop.f32.mrf.mxu0
      %v341 = vpop.f32.mrf.mxu0
      %v342 = vpop.f32.mrf.mxu0
      %343 = vdwg.mxu0
      %v344 = vmax.f32 %v339, 0.0
      %v345 = vpack.c.bf16 %v344, %v344
      %v346 = vld [vmem:[%s3] sm:$0xf]
      %v347 = vld [vmem:[%s3 + $0x4] sm:$0xf]
      %v348 = vld [vmem:[%s3 + $0x8] sm:$0xf]
      %v349 = vld [vmem:[%s3 + $0xc] sm:$0xf]
      %v350 = vld [vmem:[%s3 + $0x10] sm:$0xf]
      %v351 = vld [vmem:[%s3 + $0x14] sm:$0xf]
      %v352 = vld [vmem:[%s3 + $0x18] sm:$0xf]
      %v353 = vld [vmem:[%s3 + $0x1c] sm:$0xf]
      %v354 = vld [vmem:[%s4] sm:$0x1]
      %v356 = vlaneseq
      %v357 = vshrl.u32 %v356, 7
      %v358 = vsub.s32 0, %v357
      %v359 = vrot.slane %v354, %v358
      %v369 = vunpack.c.l.b16 %v346
      %v370 = vunpack.c.l.b16 %v347
      %v371 = vunpack.c.l.b16 %v348
      %v372 = vunpack.c.l.b16 %v349
      %v373 = vunpack.c.l.b16 %v350
      %v374 = vunpack.c.l.b16 %v351
      %v375 = vunpack.c.l.b16 %v352
      %v376 = vunpack.c.l.b16 %v353
      %v377 = vpack.c.b16 %v370, %v369
      %v378 = vpack.c.b16 %v372, %v371
      %v379 = vpack.c.b16 %v374, %v373
      %v380 = vpack.c.b16 %v376, %v375
      %vm385 = vcmask 523264
      %v387 = vsel %vm385, %v345, 0
      %389 = vmatprep.subr.bf16.mxu0 0
      %390 = vmatpush1.bf16.msra.mxu0 0
      %391 = vmatprep.subr.bf16.mxu0 0
      %392 = vmatpush1.bf16.msra.mxu0 0
      %393 = vmatprep.subr.bf16.mxu0 0
      %394 = vmatpush1.bf16.msra.mxu0 0
      %395 = vmatprep.subr.bf16.mxu0 0
      %396 = vmatpush1.bf16.msra.mxu0 0
      %397 = vmatprep.subr.bf16.mxu0 0
      %398 = vmatpush1.bf16.msra.mxu0 %v380
      %399 = vmatprep.subr.bf16.mxu0 0
      %400 = vmatpush1.bf16.msra.mxu0 %v379
      %401 = vmatprep.subr.bf16.mxu0 0
      %402 = vmatpush1.bf16.msra.mxu0 %v378
      %403 = vmatprep.subr.bf16.mxu0 0
      %404 = vmatpush1.bf16.msra.mxu0 %v377
      %405 = vmatprep.subr.bf16.mxu0 0
      %406 = vmatpush2.bf16.msra.mxu0 0
      %407 = vmatprep.subr.bf16.mxu0 0
      %408 = vmatpush2.bf16.msra.mxu0 0
      %409 = vmatprep.subr.bf16.mxu0 0
      %410 = vmatpush2.bf16.msra.mxu0 0
      %411 = vmatprep.subr.bf16.mxu0 0
      %412 = vmatpush2.bf16.msra.mxu0 0
      %413 = vmatprep.subr.bf16.mxu0 0
      %414 = vmatpush2.bf16.msra.mxu0 0
      %415 = vmatprep.subr.bf16.mxu0 0
      %416 = vmatpush2.bf16.msra.mxu0 0
      %417 = vmatprep.subr.bf16.mxu0 0
      %418 = vmatpush2.bf16.msra.mxu0 0
      %419 = vmatprep.subr.bf16.mxu0 0
      %420 = vmatpush2.bf16.msra.mxu0 0
      %421 = vmatprep.mubr.bf16.mxu0 0
      %422 = vmatmul.mubr.bf16.gmra.mxu0 %v387
      %v423 = vpop.f32.mrf.mxu0
      %v424 = vadd.f32 %v359, %v423
      %v425 = vpop.f32.mrf.mxu0
      %v426 = vpop.f32.mrf.mxu0
      %v427 = vpop.f32.mrf.mxu0
      %428 = vdwg.mxu0
      %v429 = vld [vmem:[%s5] sm:$0x1]
      %v430 = vld [vmem:[%s6] sm:$0x1]
      %v431 = vadd.f32 %v275, %v424
      %v432 = vsel %vm300, %v431, 0.0
      %433 = vadd.xlane.f32.xlu0 %v432
      %v434 = vpop.xlane.xlu0 %433
      %v435 = vrcp.pop 32.0
      %v436 = vmul.f32 %v434, %v435
      %v437 = vsub.f32 %v431, %v436
      %v438 = vmul.f32 %v437, %v437
      %v439 = vsel %vm300, %v438, 0.0
      %440 = vadd.xlane.f32.xlu0 %v439
      %v441 = vpop.xlane.xlu0 %440
      %v442 = vmul.f32 %v441, %v435
      %v443 = vadd.f32 %v442, 1e-05
      %v444 = vrsqrt.pop %v443
      %v445 = vmul.f32 %v437, %v444
      %v447 = vlaneseq
      %v448 = vshrl.u32 %v447, 7
      %v449 = vsub.s32 0, %v448
      %v450 = vrot.slane %v429, %v449
      %v452 = vmul.f32 %v445, %v450
      %v454 = vlaneseq
      %v455 = vshrl.u32 %v454, 7
      %v456 = vsub.s32 0, %v455
      %v457 = vrot.slane %v430, %v456
      %v459 = vadd.f32 %v452, %v457
      %460 = vst.msk [vmem:[%s273] sm:$0xff] %vm300, %v459
      %p461 = scmp.lt.s32.totalorder %s18, 1
      %s462 = scalar_select %p461, %s18, 1
      %s463 = smul.addr %s462, 8
      %s464 = scalar_lea.vmem %s7, %s463
      // Predicated region
      $region49: #{_lambda_.3} parent=47 // pred_check
        %p465 = pneg %p188
      $region50: #{_lambda_.3} parent=47 // pred_check_branch
        %467 = sbr.rel (%p465) target = $region52
      $region51: #{_lambda_.3} parent=47 // pred_region
        _
      $region52: #{_lambda_.3} parent=47 // pred_fallthru
        _
    $region48: #{_lambda_.3} parent=5 // pred_fallthru
      _
    %p468 = scmp.le.s32.totalorder 2, %s13
    // Predicated region
    $region53: #{_lambda_.3} parent=5 // pred_check
      %p469 = pneg %p468
    $region54: #{_lambda_.3} parent=5 // pred_check_branch
      %471 = sbr.rel (%p469) target = $region56
    $region55: #{_lambda_.3} parent=5 // pred_region
      %s472 = ssub.s32 %s13, 2
      // Predicated region
      $region57: #{_lambda_.3} parent=55 // pred_check
        %p473 = pneg %p194
      $region58: #{_lambda_.3} parent=55 // pred_check_branch
        %475 = sbr.rel (%p473) target = $region60
      $region59: #{_lambda_.3} parent=55 // pred_region
        %p476 = scmp.lt.s32.totalorder %s19, 1
        %s477 = scalar_select %p476, %s19, 1
        %s478 = smul.addr %s477, 8
        %s479 = scalar_lea.vmem %s7, %s478
      $region60: #{_lambda_.3} parent=55 // pred_fallthru
        _
    $region56: #{_lambda_.3} parent=5 // pred_fallthru
      _
  $region6: #{_lambda_.3} parent=0 // loop_footer
    %s17 = sadd.s32 1, %s13
  $region7: #{_lambda_.3} parent=0 // loop_footer_branch
    %12 = sbr.rel target = $region3
  $region8: #{_lambda_.3} parent=0 // loop_exit
    _

// kernel: _lambda_.2
$region0: #{_lambda_.2}
  #allocation0 [shape = 'u32[]', space=smem, size = 0x4, offset = 0x4, fixed_abs, tag = 'smem constant byte address 0x4 - core index']
  #allocation1 [shape = 'u32[144,128]{1,0:T(1,128)}', space=vmem, size = 0x12000, scoped, tag = 'internal scratch']
  %s0 = inlined_call_operand.vmem [shape: f32[2,8,32], index: 0, kind: input, shape index: {}, may-alias: {0,7}]
  %s1 = inlined_call_operand.vmem [shape: bf16[32,96], index: 1, kind: input, shape index: {}]
  %s2 = inlined_call_operand.vmem [shape: f32[1,96], index: 2, kind: input, shape index: {}]
  %s3 = inlined_call_operand.vmem [shape: bf16[32,32], index: 3, kind: input, shape index: {}]
  %s4 = inlined_call_operand.vmem [shape: f32[1,32], index: 4, kind: input, shape index: {}]
  %s5 = inlined_call_operand.vmem [shape: f32[1,32], index: 5, kind: input, shape index: {}]
  %s6 = inlined_call_operand.vmem [shape: f32[1,32], index: 6, kind: input, shape index: {}]
  %s7 = inlined_call_operand.vmem [shape: f32[2,8,32], index: 7, kind: output, shape index: {}, may-alias: {0,7}]
  %s8 = sld [smem:[#allocation0]]
  $region61: #{_lambda_.2} parent=0
    _
  %s10 = ssub.s32 1, %s8
  %s11 = scalar_select 0, %s10, %s8
  loop: start=0, step=1, limit=4
  $region2: #{_lambda_.2} parent=0 // loop_pre_header
    _
  $region3: #{_lambda_.2} parent=0 // loop_header
    %s13 = sphi 0, %s17
    %p14 = scmp.ge.s32.totalorder %s13, 4
    %s23 = sphi 0, %s25
    %s26 = sphi 0, %s23
    %s27 = sphi 0, %s26
    %s43 = sphi 0, %s27
    %s47 = sphi 0, %s47
    %s49 = sphi 0, %s47
    %s50 = sphi 0, %s49
    %s64 = sphi 0, %s50
    %s68 = sphi 0, %s68
    %s70 = sphi 0, %s68
    %s71 = sphi 0, %s70
    %s85 = sphi 0, %s71
    %s89 = sphi 0, %s89
    %s91 = sphi 0, %s89
    %s92 = sphi 0, %s91
    %s106 = sphi 0, %s92
    %s110 = sphi 0, %s110
    %s112 = sphi 0, %s110
    %s113 = sphi 0, %s112
    %s127 = sphi 0, %s113
    %s131 = sphi 0, %s131
    %s133 = sphi 0, %s131
    %s134 = sphi 0, %s133
    %s148 = sphi 0, %s134
    %s152 = sphi 0, %s152
    %s154 = sphi 0, %s152
    %s155 = sphi 0, %s154
    %s169 = sphi 0, %s155
    %s175 = sphi 0, %s177
    %s178 = sphi 0, %s175
    %s179 = sphi 0, %s178
    %s195 = sphi 0, %s179
  $region4: #{_lambda_.2} parent=0 // loop_header_branch
    %16 = sbr.rel (%p14) target = $region8
  $region5: #{_lambda_.2} parent=0 // loop_body
    %s18 = ssub.s32 %s13, 1
    %s19 = ssub.s32 %s13, 2
    %s20 = sadd.s32 %s13, 1
    %s21 = ssub.s32 %s13, %s20
    %p22 = scmp.eq.s32.totalorder %s21, 0
    %s24 = sadd.s32 %s23, 1
    %s25 = scalar_select %p22, %s23, %s24
    %p28 = pneg %p22
    %p29 = scmp.eq.s32.totalorder %s13, 1
    %p30 = por %p28, %p29
    %p31 = scmp.ne.s32.totalorder %s23, %s26
    %p32 = scmp.eq.s32.totalorder %s13, 0
    %p33 = por %p31, %p32
    %p34 = scmp.ne.s32.totalorder %s23, %s26
    %p35 = scmp.eq.s32.totalorder %s18, 1
    %p36 = por %p34, %p35
    %p37 = scmp.ne.s32.totalorder %s26, %s27
    %p38 = scmp.eq.s32.totalorder %s18, 0
    %p39 = por %p37, %p38
    %p40 = scmp.ne.s32.totalorder %s26, %s27
    %p41 = scmp.eq.s32.totalorder %s19, 1
    %p42 = por %p40, %p41
    %p44 = scmp.ne.s32.totalorder %s27, %s43
    %p45 = scmp.eq.s32.totalorder %s19, 0
    %p46 = por %p44, %p45
    %s48 = sadd.s32 %s47, 1
    %p51 = scmp.eq.s32.totalorder %s13, 1
    %p52 = scmp.ne.s32.totalorder %s47, %s49
    %p53 = scmp.eq.s32.totalorder %s13, 0
    %p54 = por %p52, %p53
    %p55 = scmp.ne.s32.totalorder %s47, %s49
    %p56 = scmp.eq.s32.totalorder %s18, 1
    %p57 = por %p55, %p56
    %p58 = scmp.ne.s32.totalorder %s49, %s50
    %p59 = scmp.eq.s32.totalorder %s18, 0
    %p60 = por %p58, %p59
    %p61 = scmp.ne.s32.totalorder %s49, %s50
    %p62 = scmp.eq.s32.totalorder %s19, 1
    %p63 = por %p61, %p62
    %p65 = scmp.ne.s32.totalorder %s50, %s64
    %p66 = scmp.eq.s32.totalorder %s19, 0
    %p67 = por %p65, %p66
    %s69 = sadd.s32 %s68, 1
    %p72 = scmp.eq.s32.totalorder %s13, 1
    %p73 = scmp.ne.s32.totalorder %s68, %s70
    %p74 = scmp.eq.s32.totalorder %s13, 0
    %p75 = por %p73, %p74
    %p76 = scmp.ne.s32.totalorder %s68, %s70
    %p77 = scmp.eq.s32.totalorder %s18, 1
    %p78 = por %p76, %p77
    %p79 = scmp.ne.s32.totalorder %s70, %s71
    %p80 = scmp.eq.s32.totalorder %s18, 0
    %p81 = por %p79, %p80
    %p82 = scmp.ne.s32.totalorder %s70, %s71
    %p83 = scmp.eq.s32.totalorder %s19, 1
    %p84 = por %p82, %p83
    %p86 = scmp.ne.s32.totalorder %s71, %s85
    %p87 = scmp.eq.s32.totalorder %s19, 0
    %p88 = por %p86, %p87
    %s90 = sadd.s32 %s89, 1
    %p93 = scmp.eq.s32.totalorder %s13, 1
    %p94 = scmp.ne.s32.totalorder %s89, %s91
    %p95 = scmp.eq.s32.totalorder %s13, 0
    %p96 = por %p94, %p95
    %p97 = scmp.ne.s32.totalorder %s89, %s91
    %p98 = scmp.eq.s32.totalorder %s18, 1
    %p99 = por %p97, %p98
    %p100 = scmp.ne.s32.totalorder %s91, %s92
    %p101 = scmp.eq.s32.totalorder %s18, 0
    %p102 = por %p100, %p101
    %p103 = scmp.ne.s32.totalorder %s91, %s92
    %p104 = scmp.eq.s32.totalorder %s19, 1
    %p105 = por %p103, %p104
    %p107 = scmp.ne.s32.totalorder %s92, %s106
    %p108 = scmp.eq.s32.totalorder %s19, 0
    %p109 = por %p107, %p108
    %s111 = sadd.s32 %s110, 1
    %p114 = scmp.eq.s32.totalorder %s13, 1
    %p115 = scmp.ne.s32.totalorder %s110, %s112
    %p116 = scmp.eq.s32.totalorder %s13, 0
    %p117 = por %p115, %p116
    %p118 = scmp.ne.s32.totalorder %s110, %s112
    %p119 = scmp.eq.s32.totalorder %s18, 1
    %p120 = por %p118, %p119
    %p121 = scmp.ne.s32.totalorder %s112, %s113
    %p122 = scmp.eq.s32.totalorder %s18, 0
    %p123 = por %p121, %p122
    %p124 = scmp.ne.s32.totalorder %s112, %s113
    %p125 = scmp.eq.s32.totalorder %s19, 1
    %p126 = por %p124, %p125
    %p128 = scmp.ne.s32.totalorder %s113, %s127
    %p129 = scmp.eq.s32.totalorder %s19, 0
    %p130 = por %p128, %p129
    %s132 = sadd.s32 %s131, 1
    %p135 = scmp.eq.s32.totalorder %s13, 1
    %p136 = scmp.ne.s32.totalorder %s131, %s133
    %p137 = scmp.eq.s32.totalorder %s13, 0
    %p138 = por %p136, %p137
    %p139 = scmp.ne.s32.totalorder %s131, %s133
    %p140 = scmp.eq.s32.totalorder %s18, 1
    %p141 = por %p139, %p140
    %p142 = scmp.ne.s32.totalorder %s133, %s134
    %p143 = scmp.eq.s32.totalorder %s18, 0
    %p144 = por %p142, %p143
    %p145 = scmp.ne.s32.totalorder %s133, %s134
    %p146 = scmp.eq.s32.totalorder %s19, 1
    %p147 = por %p145, %p146
    %p149 = scmp.ne.s32.totalorder %s134, %s148
    %p150 = scmp.eq.s32.totalorder %s19, 0
    %p151 = por %p149, %p150
    %s153 = sadd.s32 %s152, 1
    %p156 = scmp.eq.s32.totalorder %s13, 1
    %p157 = scmp.ne.s32.totalorder %s152, %s154
    %p158 = scmp.eq.s32.totalorder %s13, 0
    %p159 = por %p157, %p158
    %p160 = scmp.ne.s32.totalorder %s152, %s154
    %p161 = scmp.eq.s32.totalorder %s18, 1
    %p162 = por %p160, %p161
    %p163 = scmp.ne.s32.totalorder %s154, %s155
    %p164 = scmp.eq.s32.totalorder %s18, 0
    %p165 = por %p163, %p164
    %p166 = scmp.ne.s32.totalorder %s154, %s155
    %p167 = scmp.eq.s32.totalorder %s19, 1
    %p168 = por %p166, %p167
    %p170 = scmp.ne.s32.totalorder %s155, %s169
    %p171 = scmp.eq.s32.totalorder %s19, 0
    %p172 = por %p170, %p171
    %s173 = ssub.s32 %s13, %s20
    %p174 = scmp.eq.s32.totalorder %s173, 0
    %s176 = sadd.s32 %s175, 1
    %s177 = scalar_select %p174, %s175, %s176
    %p180 = pneg %p174
    %p181 = scmp.eq.s32.totalorder %s13, 1
    %p182 = por %p180, %p181
    %p183 = scmp.ne.s32.totalorder %s175, %s178
    %p184 = scmp.eq.s32.totalorder %s13, 0
    %p185 = por %p183, %p184
    %p186 = scmp.ne.s32.totalorder %s175, %s178
    %p187 = scmp.eq.s32.totalorder %s18, 1
    %p188 = por %p186, %p187
    %p189 = scmp.ne.s32.totalorder %s178, %s179
    %p190 = scmp.eq.s32.totalorder %s18, 0
    %p191 = por %p189, %p190
    %p192 = scmp.ne.s32.totalorder %s178, %s179
    %p193 = scmp.eq.s32.totalorder %s19, 1
    %p194 = por %p192, %p193
    %p196 = scmp.ne.s32.totalorder %s179, %s195
    %p197 = scmp.eq.s32.totalorder %s19, 0
    %p198 = por %p196, %p197
    %p199 = scmp.le.s32.totalorder 1, %s13
    %p200 = scmp.lt.s32.totalorder %s13, 3
    %p201 = pnand %p199, %p200
    %p202 = pneg %p201
    // Predicated region
    $region9: #{_lambda_.2} parent=5 // pred_check
      _
    $region10: #{_lambda_.2} parent=5 // pred_check_branch
      %204 = sbr.rel (%p201) target = $region12
    $region11: #{_lambda_.2} parent=5 // pred_region
      %s205 = ssub.s32 %s13, 1
      // Predicated region
      $region13: #{_lambda_.2} parent=11 // pred_check
        %p206 = pneg %p60
      $region14: #{_lambda_.2} parent=11 // pred_check_branch
        %208 = sbr.rel (%p206) target = $region16
      $region15: #{_lambda_.2} parent=11 // pred_region
        _
      $region16: #{_lambda_.2} parent=11 // pred_fallthru
        _
      // Predicated region
      $region17: #{_lambda_.2} parent=11 // pred_check
        %p209 = pneg %p81
      $region18: #{_lambda_.2} parent=11 // pred_check_branch
        %211 = sbr.rel (%p209) target = $region20
      $region19: #{_lambda_.2} parent=11 // pred_region
        _
      $region20: #{_lambda_.2} parent=11 // pred_fallthru
        _
      // Predicated region
      $region21: #{_lambda_.2} parent=11 // pred_check
        %p212 = pneg %p102
      $region22: #{_lambda_.2} parent=11 // pred_check_branch
        %214 = sbr.rel (%p212) target = $region24
      $region23: #{_lambda_.2} parent=11 // pred_region
        _
      $region24: #{_lambda_.2} parent=11 // pred_fallthru
        _
      // Predicated region
      $region25: #{_lambda_.2} parent=11 // pred_check
        %p215 = pneg %p123
      $region26: #{_lambda_.2} parent=11 // pred_check_branch
        %217 = sbr.rel (%p215) target = $region28
      $region27: #{_lambda_.2} parent=11 // pred_region
        _
      $region28: #{_lambda_.2} parent=11 // pred_fallthru
        _
      // Predicated region
      $region29: #{_lambda_.2} parent=11 // pred_check
        %p218 = pneg %p144
      $region30: #{_lambda_.2} parent=11 // pred_check_branch
        %220 = sbr.rel (%p218) target = $region32
      $region31: #{_lambda_.2} parent=11 // pred_region
        _
      $region32: #{_lambda_.2} parent=11 // pred_fallthru
        _
      // Predicated region
      $region33: #{_lambda_.2} parent=11 // pred_check
        %p221 = pneg %p165
      $region34: #{_lambda_.2} parent=11 // pred_check_branch
        %223 = sbr.rel (%p221) target = $region36
      $region35: #{_lambda_.2} parent=11 // pred_region
        _
      $region36: #{_lambda_.2} parent=11 // pred_fallthru
        _
    $region12: #{_lambda_.2} parent=5 // pred_fallthru
      _
    %p224 = scmp.lt.s32.totalorder %s13, 2
    // Predicated region
    $region37: #{_lambda_.2} parent=5 // pred_check
      %p225 = pneg %p224
    $region38: #{_lambda_.2} parent=5 // pred_check_branch
      %227 = sbr.rel (%p225) target = $region40
    $region39: #{_lambda_.2} parent=5 // pred_region
      // Predicated region
      $region41: #{_lambda_.2} parent=39 // pred_check
        %p228 = pneg %p33
      $region42: #{_lambda_.2} parent=39 // pred_check_branch
        %230 = sbr.rel (%p228) target = $region44
      $region43: #{_lambda_.2} parent=39 // pred_region
        %p231 = scmp.lt.s32.totalorder %s13, 1
        %s232 = scalar_select %p231, %s13, 1
        %s233 = smul.addr %s232, 8
        %s234 = scalar_lea.vmem %s0, %s233
      $region44: #{_lambda_.2} parent=39 // pred_fallthru
        _
    $region40: #{_lambda_.2} parent=5 // pred_fallthru
      _
    %p235 = scmp.le.s32.totalorder 1, %s13
    %p236 = scmp.lt.s32.totalorder %s13, 3
    %p237 = pnand %p235, %p236
    %p238 = pneg %p237
    // Predicated region
    $region45: #{_lambda_.2} parent=5 // pred_check
      _
    $region46: #{_lambda_.2} parent=5 // pred_check_branch
      %240 = sbr.rel (%p237) target = $region48
    $region47: #{_lambda_.2} parent=5 // pred_region
      %s241 = ssub.s32 %s13, 1
      %p242 = scmp.lt.s32.totalorder %s18, 1
      %s243 = scalar_select %p242, %s18, 1
      %s244 = smul.addr %s243, 8
      %s245 = scalar_lea.vmem %s0, %s244
      %p246 = pneg %p39
      %p247 = pneg %p36
      %p248 = pneg %p60
      %p249 = pneg %p57
      %p250 = pneg %p81
      %p251 = pneg %p78
      %p252 = pneg %p102
      %p253 = pneg %p99
      %p254 = pneg %p123
      %p255 = pneg %p120
      %p256 = pneg %p144
      %p257 = pneg %p141
      %p258 = pneg %p165
      %p259 = pneg %p162
      %p260 = pneg %p191
      %p261 = pneg %p188
      %p262 = scmp.lt.s32.totalorder %s18, 1
      %s263 = scalar_select %p262, %s18, 1
      %s264 = smul.addr %s263, 8
      %s265 = scalar_lea.vmem %s7, %s264
      %p266 = scmp.lt.s32.totalorder %s18, 1
      %s267 = scalar_select %p266, %s18, 1
      %s268 = smul.addr %s267, 8
      %s269 = scalar_lea.vmem %s0, %s268
      %p270 = scmp.lt.s32.totalorder %s18, 1
      %s271 = scalar_select %p270, %s18, 1
      %s272 = smul.addr %s271, 8
      %s273 = scalar_lea.vmem %s7, %s272
      %v275 = vld [vmem:[%s269] sm:$0xff]
      %v276 = vpack.c.bf16 %v275, %v275
      %v277 = vld [vmem:[%s1] sm:$0xf]
      %v278 = vld [vmem:[%s1 + $0x4] sm:$0xf]
      %v279 = vld [vmem:[%s1 + $0x8] sm:$0xf]
      %v280 = vld [vmem:[%s1 + $0xc] sm:$0xf]
      %v281 = vld [vmem:[%s2] sm:$0x1]
      %v283 = vlaneseq
      %v284 = vshrl.u32 %v283, 7
      %v285 = vsub.s32 0, %v284
      %v286 = vrot.slane %v281, %v285
      %v292 = vunpack.c.l.b16 %v277
      %v293 = vunpack.c.l.b16 %v278
      %v294 = vunpack.c.l.b16 %v279
      %v295 = vunpack.c.l.b16 %v280
      %v296 = vpack.c.b16 %v293, %v292
      %v297 = vpack.c.b16 %v295, %v294
      %vm300 = vcmask 261120
      %v302 = vsel %vm300, %v276, 0
      %304 = vmatprep.subr.bf16.mxu0 0
      %305 = vmatpush1.bf16.msra.mxu0 0
      %306 = vmatprep.subr.bf16.mxu0 0
      %307 = vmatpush1.bf16.msra.mxu0 0
      %308 = vmatprep.subr.bf16.mxu0 0
      %309 = vmatpush1.bf16.msra.mxu0 0
      %310 = vmatprep.subr.bf16.mxu0 0
      %311 = vmatpush1.bf16.msra.mxu0 0
      %312 = vmatprep.subr.bf16.mxu0 0
      %313 = vmatpush1.bf16.msra.mxu0 0
      %314 = vmatprep.subr.bf16.mxu0 0
      %315 = vmatpush1.bf16.msra.mxu0 0
      %316 = vmatprep.subr.bf16.mxu0 0
      %317 = vmatpush1.bf16.msra.mxu0 %v297
      %318 = vmatprep.subr.bf16.mxu0 0
      %319 = vmatpush1.bf16.msra.mxu0 %v296
      %320 = vmatprep.subr.bf16.mxu0 0
      %321 = vmatpush2.bf16.msra.mxu0 0
      %322 = vmatprep.subr.bf16.mxu0 0
      %323 = vmatpush2.bf16.msra.mxu0 0
      %324 = vmatprep.subr.bf16.mxu0 0
      %325 = vmatpush2.bf16.msra.mxu0 0
      %326 = vmatprep.subr.bf16.mxu0 0
      %327 = vmatpush2.bf16.msra.mxu0 0
      %328 = vmatprep.subr.bf16.mxu0 0
      %329 = vmatpush2.bf16.msra.mxu0 0
      %330 = vmatprep.subr.bf16.mxu0 0
      %331 = vmatpush2.bf16.msra.mxu0 0
      %332 = vmatprep.subr.bf16.mxu0 0
      %333 = vmatpush2.bf16.msra.mxu0 0
      %334 = vmatprep.subr.bf16.mxu0 0
      %335 = vmatpush2.bf16.msra.mxu0 0
      %336 = vmatprep.mubr.bf16.mxu0 0
      %337 = vmatmul.mubr.bf16.gmra.mxu0 %v302
      %v338 = vpop.f32.mrf.mxu0
      %v339 = vadd.f32 %v286, %v338
      %v340 = vpop.f32.mrf.mxu0
      %v341 = vpop.f32.mrf.mxu0
      %v342 = vpop.f32.mrf.mxu0
      %343 = vdwg.mxu0
      %v344 = vmul.f32 %v339, 0.35355338
      %346 = vrot.lane.b32.xlu0 %v344, 120
      %v347 = vpop.permute.xlu0 %346
      %349 = vrot.lane.b32.xlu0 %v344, 112
      %v350 = vpop.permute.xlu0 %349
      %352 = vrot.lane.b32.xlu0 %v344, 104
      %v353 = vpop.permute.xlu0 %352
      %v355 = vpack.c.bf16 %v344, %v344
      %v356 = vpack.c.bf16 %v347, %v347
      %v357 = vpack.c.bf16 %v350, %v350
      %v358 = vpack.c.bf16 %v353, %v353
      %360 = vrot.lane.b32.xlu0 %v339, 120
      %v361 = vpop.permute.xlu0 %360
      %363 = vrot.lane.b32.xlu0 %v339, 112
      %v364 = vpop.permute.xlu0 %363
      %366 = vrot.lane.b32.xlu0 %v339, 104
      %v367 = vpop.permute.xlu0 %366
      %v369 = vpack.c.bf16 %v339, %v339
      %v370 = vpack.c.bf16 %v361, %v361
      %v371 = vpack.c.bf16 %v364, %v364
      %v372 = vpack.c.bf16 %v367, %v367
      %374 = vrot.lane.b32.xlu0 %v369, 96
      %v375 = vpop.permute.xlu0 %374
      %vm376 = vcmask 64512
      %v378 = vsel %vm376, %v355, 0
      %v381 = vsel %vm376, %v375, 0
      %383 = vmatprep.subr.bf16.mxu0 0
      %384 = vmatpush1.bf16.xpose.msra.mxu0 0
      %385 = vmatprep.subr.bf16.mxu0 0
      %386 = vmatpush1.bf16.xpose.msra.mxu0 0
      %387 = vmatprep.subr.bf16.mxu0 0
      %388 = vmatpush1.bf16.xpose.msra.mxu0 0
      %389 = vmatprep.subr.bf16.mxu0 0
      %390 = vmatpush1.bf16.xpose.msra.mxu0 0
      %391 = vmatprep.subr.bf16.mxu0 0
      %392 = vmatpush1.bf16.xpose.msra.mxu0 0
      %393 = vmatprep.subr.bf16.mxu0 0
      %394 = vmatpush1.bf16.xpose.msra.mxu0 0
      %395 = vmatprep.subr.bf16.mxu0 0
      %396 = vmatpush1.bf16.xpose.msra.mxu0 0
      %397 = vmatprep.subr.bf16.mxu0 0
      %398 = vmatpush1.bf16.xpose.msra.mxu0 %v381
      %399 = vmatprep.subr.bf16.mxu0 0
      %400 = vmatpush2.bf16.xpose.msra.mxu0 0
      %401 = vmatprep.subr.bf16.mxu0 0
      %402 = vmatpush2.bf16.xpose.msra.mxu0 0
      %403 = vmatprep.subr.bf16.mxu0 0
      %404 = vmatpush2.bf16.xpose.msra.mxu0 0
      %405 = vmatprep.subr.bf16.mxu0 0
      %406 = vmatpush2.bf16.xpose.msra.mxu0 0
      %407 = vmatprep.subr.bf16.mxu0 0
      %408 = vmatpush2.bf16.xpose.msra.mxu0 0
      %409 = vmatprep.subr.bf16.mxu0 0
      %410 = vmatpush2.bf16.xpose.msra.mxu0 0
      %411 = vmatprep.subr.bf16.mxu0 0
      %412 = vmatpush2.bf16.xpose.msra.mxu0 0
      %413 = vmatprep.subr.bf16.mxu0 0
      %414 = vmatpush2.bf16.xpose.msra.mxu0 0
      %415 = vmatprep.mubr.bf16.mxu0 0
      %416 = vmatmul.mubr.bf16.gmra.mxu0 %v378
      %v417 = vpop.f32.mrf.mxu0
      %v418 = vadd.f32 0.0, %v417
      %v419 = vpop.f32.mrf.mxu0
      %v420 = vpop.f32.mrf.mxu0
      %v421 = vpop.f32.mrf.mxu0
      %422 = vdwg.mxu0
      %424 = vrot.lane.b32.xlu0 %v370, 96
      %v425 = vpop.permute.xlu0 %424
      %v427 = vsel %vm376, %v356, 0
      %v430 = vsel %vm376, %v425, 0
      %432 = vmatprep.subr.bf16.mxu0 0
      %433 = vmatpush1.bf16.xpose.msra.mxu0 0
      %434 = vmatprep.subr.bf16.mxu0 0
      %435 = vmatpush1.bf16.xpose.msra.mxu0 0
      %436 = vmatprep.subr.bf16.mxu0 0
      %437 = vmatpush1.bf16.xpose.msra.mxu0 0
      %438 = vmatprep.subr.bf16.mxu0 0
      %439 = vmatpush1.bf16.xpose.msra.mxu0 0
      %440 = vmatprep.subr.bf16.mxu0 0
      %441 = vmatpush1.bf16.xpose.msra.mxu0 0
      %442 = vmatprep.subr.bf16.mxu0 0
      %443 = vmatpush1.bf16.xpose.msra.mxu0 0
      %444 = vmatprep.subr.bf16.mxu0 0
      %445 = vmatpush1.bf16.xpose.msra.mxu0 0
      %446 = vmatprep.subr.bf16.mxu0 0
      %447 = vmatpush1.bf16.xpose.msra.mxu0 %v430
      %448 = vmatprep.subr.bf16.mxu0 0
      %449 = vmatpush2.bf16.xpose.msra.mxu0 0
      %450 = vmatprep.subr.bf16.mxu0 0
      %451 = vmatpush2.bf16.xpose.msra.mxu0 0
      %452 = vmatprep.subr.bf16.mxu0 0
      %453 = vmatpush2.bf16.xpose.msra.mxu0 0
      %454 = vmatprep.subr.bf16.mxu0 0
      %455 = vmatpush2.bf16.xpose.msra.mxu0 0
      %456 = vmatprep.subr.bf16.mxu0 0
      %457 = vmatpush2.bf16.xpose.msra.mxu0 0
      %458 = vmatprep.subr.bf16.mxu0 0
      %459 = vmatpush2.bf16.xpose.msra.mxu0 0
      %460 = vmatprep.subr.bf16.mxu0 0
      %461 = vmatpush2.bf16.xpose.msra.mxu0 0
      %462 = vmatprep.subr.bf16.mxu0 0
      %463 = vmatpush2.bf16.xpose.msra.mxu0 0
      %464 = vmatprep.mubr.bf16.mxu0 0
      %465 = vmatmul.mubr.bf16.gmra.mxu0 %v427
      %v466 = vpop.f32.mrf.mxu0
      %v467 = vadd.f32 0.0, %v466
      %v468 = vpop.f32.mrf.mxu0
      %v469 = vpop.f32.mrf.mxu0
      %v470 = vpop.f32.mrf.mxu0
      %471 = vdwg.mxu0
      %473 = vrot.lane.b32.xlu0 %v371, 96
      %v474 = vpop.permute.xlu0 %473
      %v476 = vsel %vm376, %v357, 0
      %v479 = vsel %vm376, %v474, 0
      %481 = vmatprep.subr.bf16.mxu0 0
      %482 = vmatpush1.bf16.xpose.msra.mxu0 0
      %483 = vmatprep.subr.bf16.mxu0 0
      %484 = vmatpush1.bf16.xpose.msra.mxu0 0
      %485 = vmatprep.subr.bf16.mxu0 0
      %486 = vmatpush1.bf16.xpose.msra.mxu0 0
      %487 = vmatprep.subr.bf16.mxu0 0
      %488 = vmatpush1.bf16.xpose.msra.mxu0 0
      %489 = vmatprep.subr.bf16.mxu0 0
      %490 = vmatpush1.bf16.xpose.msra.mxu0 0
      %491 = vmatprep.subr.bf16.mxu0 0
      %492 = vmatpush1.bf16.xpose.msra.mxu0 0
      %493 = vmatprep.subr.bf16.mxu0 0
      %494 = vmatpush1.bf16.xpose.msra.mxu0 0
      %495 = vmatprep.subr.bf16.mxu0 0
      %496 = vmatpush1.bf16.xpose.msra.mxu0 %v479
      %497 = vmatprep.subr.bf16.mxu0 0
      %498 = vmatpush2.bf16.xpose.msra.mxu0 0
      %499 = vmatprep.subr.bf16.mxu0 0
      %500 = vmatpush2.bf16.xpose.msra.mxu0 0
      %501 = vmatprep.subr.bf16.mxu0 0
      %502 = vmatpush2.bf16.xpose.msra.mxu0 0
      %503 = vmatprep.subr.bf16.mxu0 0
      %504 = vmatpush2.bf16.xpose.msra.mxu0 0
      %505 = vmatprep.subr.bf16.mxu0 0
      %506 = vmatpush2.bf16.xpose.msra.mxu0 0
      %507 = vmatprep.subr.bf16.mxu0 0
      %508 = vmatpush2.bf16.xpose.msra.mxu0 0
      %509 = vmatprep.subr.bf16.mxu0 0
      %510 = vmatpush2.bf16.xpose.msra.mxu0 0
      %511 = vmatprep.subr.bf16.mxu0 0
      %512 = vmatpush2.bf16.xpose.msra.mxu0 0
      %513 = vmatprep.mubr.bf16.mxu0 0
      %514 = vmatmul.mubr.bf16.gmra.mxu0 %v476
      %v515 = vpop.f32.mrf.mxu0
      %v516 = vadd.f32 0.0, %v515
      %v517 = vpop.f32.mrf.mxu0
      %v518 = vpop.f32.mrf.mxu0
      %v519 = vpop.f32.mrf.mxu0
      %520 = vdwg.mxu0
      %522 = vrot.lane.b32.xlu0 %v372, 96
      %v523 = vpop.permute.xlu0 %522
      %v525 = vsel %vm376, %v358, 0
      %v528 = vsel %vm376, %v523, 0
      %530 = vmatprep.subr.bf16.mxu0 0
      %531 = vmatpush1.bf16.xpose.msra.mxu0 0
      %532 = vmatprep.subr.bf16.mxu0 0
      %533 = vmatpush1.bf16.xpose.msra.mxu0 0
      %534 = vmatprep.subr.bf16.mxu0 0
      %535 = vmatpush1.bf16.xpose.msra.mxu0 0
      %536 = vmatprep.subr.bf16.mxu0 0
      %537 = vmatpush1.bf16.xpose.msra.mxu0 0
      %538 = vmatprep.subr.bf16.mxu0 0
      %539 = vmatpush1.bf16.xpose.msra.mxu0 0
      %540 = vmatprep.subr.bf16.mxu0 0
      %541 = vmatpush1.bf16.xpose.msra.mxu0 0
      %542 = vmatprep.subr.bf16.mxu0 0
      %543 = vmatpush1.bf16.xpose.msra.mxu0 0
      %544 = vmatprep.subr.bf16.mxu0 0
      %545 = vmatpush1.bf16.xpose.msra.mxu0 %v528
      %546 = vmatprep.subr.bf16.mxu0 0
      %547 = vmatpush2.bf16.xpose.msra.mxu0 0
      %548 = vmatprep.subr.bf16.mxu0 0
      %549 = vmatpush2.bf16.xpose.msra.mxu0 0
      %550 = vmatprep.subr.bf16.mxu0 0
      %551 = vmatpush2.bf16.xpose.msra.mxu0 0
      %552 = vmatprep.subr.bf16.mxu0 0
      %553 = vmatpush2.bf16.xpose.msra.mxu0 0
      %554 = vmatprep.subr.bf16.mxu0 0
      %555 = vmatpush2.bf16.xpose.msra.mxu0 0
      %556 = vmatprep.subr.bf16.mxu0 0
      %557 = vmatpush2.bf16.xpose.msra.mxu0 0
      %558 = vmatprep.subr.bf16.mxu0 0
      %559 = vmatpush2.bf16.xpose.msra.mxu0 0
      %560 = vmatprep.subr.bf16.mxu0 0
      %561 = vmatpush2.bf16.xpose.msra.mxu0 0
      %562 = vmatprep.mubr.bf16.mxu0 0
      %563 = vmatmul.mubr.bf16.gmra.mxu0 %v525
      %v564 = vpop.f32.mrf.mxu0
      %v565 = vadd.f32 0.0, %v564
      %v566 = vpop.f32.mrf.mxu0
      %v567 = vpop.f32.mrf.mxu0
      %v568 = vpop.f32.mrf.mxu0
      %569 = vdwg.mxu0
      %v570 = vsel %vm376, %v418, -inf
      %571 = vmax.xlane.f32.xlu0 %v570
      %v572 = vpop.xlane.xlu0 %571
      %v573 = vsel %vm376, %v467, -inf
      %574 = vmax.xlane.f32.xlu0 %v573
      %v575 = vpop.xlane.xlu0 %574
      %v576 = vsel %vm376, %v516, -inf
      %577 = vmax.xlane.f32.xlu0 %v576
      %v578 = vpop.xlane.xlu0 %577
      %v579 = vsel %vm376, %v565, -inf
      %580 = vmax.xlane.f32.xlu0 %v579
      %v581 = vpop.xlane.xlu0 %580
      %v582 = vsub.f32 %v418, %v572
      %v583 = vsub.f32 %v467, %v575
      %v584 = vsub.f32 %v516, %v578
      %v585 = vsub.f32 %v565, %v581
      %v586 = vmul.f32 %v582, 1.442695
      %v587 = vpow.pop %v586
      %v588 = vmul.f32 %v583, 1.442695
      %v589 = vpow.pop %v588
      %v590 = vmul.f32 %v584, 1.442695
      %v591 = vpow.pop %v590
      %v592 = vmul.f32 %v585, 1.442695
      %v593 = vpow.pop %v592
      %v594 = vsel %vm376, %v587, 0.0
      %595 = vadd.xlane.f32.xlu0 %v594
      %v596 = vpop.xlane.xlu0 %595
      %v597 = vsel %vm376, %v589, 0.0
      %598 = vadd.xlane.f32.xlu0 %v597
      %v599 = vpop.xlane.xlu0 %598
      %v600 = vsel %vm376, %v591, 0.0
      %601 = vadd.xlane.f32.xlu0 %v600
      %v602 = vpop.xlane.xlu0 %601
      %v603 = vsel %vm376, %v593, 0.0
      %604 = vadd.xlane.f32.xlu0 %v603
      %v605 = vpop.xlane.xlu0 %604
      %v606 = vrcp.pop %v596
      %v607 = vrcp.pop %v599
      %v608 = vrcp.pop %v602
      %v609 = vrcp.pop %v605
      %v610 = vmul.f32 %v587, %v606
      %v611 = vmul.f32 %v589, %v607
      %v612 = vmul.f32 %v591, %v608
      %v613 = vmul.f32 %v593, %v609
      %v614 = vpack.c.bf16 %v610, %v610
      %v615 = vpack.c.bf16 %v611, %v611
      %v616 = vpack.c.bf16 %v612, %v612
      %v617 = vpack.c.bf16 %v613, %v613
      %618 = vrot.lane.b32.xlu0 %v369, 64
      %v619 = vpop.permute.xlu0 %618
      %v621 = vsel %vm376, %v614, 0
      %vm623 = vcmask 1043456
      %v625 = vsel %vm623, %v619, 0
      %627 = vmatprep.subr.bf16.mxu0 0
      %628 = vmatpush1.bf16.msra.mxu0 0
      %629 = vmatprep.subr.bf16.mxu0 0
      %630 = vmatpush1.bf16.msra.mxu0 0
      %631 = vmatprep.subr.bf16.mxu0 0
      %632 = vmatpush1.bf16.msra.mxu0 0
      %633 = vmatprep.subr.bf16.mxu0 0
      %634 = vmatpush1.bf16.msra.mxu0 0
      %635 = vmatprep.subr.bf16.mxu0 0
      %636 = vmatpush1.bf16.msra.mxu0 0
      %637 = vmatprep.subr.bf16.mxu0 0
      %638 = vmatpush1.bf16.msra.mxu0 0
      %639 = vmatprep.subr.bf16.mxu0 0
      %640 = vmatpush1.bf16.msra.mxu0 0
      %641 = vmatprep.subr.bf16.mxu0 0
      %642 = vmatpush1.bf16.msra.mxu0 %v625
      %643 = vmatprep.subr.bf16.mxu0 0
      %644 = vmatpush2.bf16.msra.mxu0 0
      %645 = vmatprep.subr.bf16.mxu0 0
      %646 = vmatpush2.bf16.msra.mxu0 0
      %647 = vmatprep.subr.bf16.mxu0 0
      %648 = vmatpush2.bf16.msra.mxu0 0
      %649 = vmatprep.subr.bf16.mxu0 0
      %650 = vmatpush2.bf16.msra.mxu0 0
      %651 = vmatprep.subr.bf16.mxu0 0
      %652 = vmatpush2.bf16.msra.mxu0 0
      %653 = vmatprep.subr.bf16.mxu0 0
      %654 = vmatpush2.bf16.msra.mxu0 0
      %655 = vmatprep.subr.bf16.mxu0 0
      %656 = vmatpush2.bf16.msra.mxu0 0
      %657 = vmatprep.subr.bf16.mxu0 0
      %658 = vmatpush2.bf16.msra.mxu0 0
      %659 = vmatprep.mubr.bf16.mxu0 0
      %660 = vmatmul.mubr.bf16.gmra.mxu0 %v621
      %v661 = vpop.f32.mrf.mxu0
      %v662 = vadd.f32 0.0, %v661
      %v663 = vpop.f32.mrf.mxu0
      %v664 = vpop.f32.mrf.mxu0
      %v665 = vpop.f32.mrf.mxu0
      %666 = vdwg.mxu0
      %667 = vrot.lane.b32.xlu0 %v370, 64
      %v668 = vpop.permute.xlu0 %667
      %v670 = vsel %vm376, %v615, 0
      %v673 = vsel %vm623, %v668, 0
      %675 = vmatprep.subr.bf16.mxu0 0
      %676 = vmatpush1.bf16.msra.mxu0 0
      %677 = vmatprep.subr.bf16.mxu0 0
      %678 = vmatpush1.bf16.msra.mxu0 0
      %679 = vmatprep.subr.bf16.mxu0 0
      %680 = vmatpush1.bf16.msra.mxu0 0
      %681 = vmatprep.subr.bf16.mxu0 0
      %682 = vmatpush1.bf16.msra.mxu0 0
      %683 = vmatprep.subr.bf16.mxu0 0
      %684 = vmatpush1.bf16.msra.mxu0 0
      %685 = vmatprep.subr.bf16.mxu0 0
      %686 = vmatpush1.bf16.msra.mxu0 0
      %687 = vmatprep.subr.bf16.mxu0 0
      %688 = vmatpush1.bf16.msra.mxu0 0
      %689 = vmatprep.subr.bf16.mxu0 0
      %690 = vmatpush1.bf16.msra.mxu0 %v673
      %691 = vmatprep.subr.bf16.mxu0 0
      %692 = vmatpush2.bf16.msra.mxu0 0
      %693 = vmatprep.subr.bf16.mxu0 0
      %694 = vmatpush2.bf16.msra.mxu0 0
      %695 = vmatprep.subr.bf16.mxu0 0
      %696 = vmatpush2.bf16.msra.mxu0 0
      %697 = vmatprep.subr.bf16.mxu0 0
      %698 = vmatpush2.bf16.msra.mxu0 0
      %699 = vmatprep.subr.bf16.mxu0 0
      %700 = vmatpush2.bf16.msra.mxu0 0
      %701 = vmatprep.subr.bf16.mxu0 0
      %702 = vmatpush2.bf16.msra.mxu0 0
      %703 = vmatprep.subr.bf16.mxu0 0
      %704 = vmatpush2.bf16.msra.mxu0 0
      %705 = vmatprep.subr.bf16.mxu0 0
      %706 = vmatpush2.bf16.msra.mxu0 0
      %707 = vmatprep.mubr.bf16.mxu0 0
      %708 = vmatmul.mubr.bf16.gmra.mxu0 %v670
      %v709 = vpop.f32.mrf.mxu0
      %v710 = vadd.f32 0.0, %v709
      %v711 = vpop.f32.mrf.mxu0
      %v712 = vpop.f32.mrf.mxu0
      %v713 = vpop.f32.mrf.mxu0
      %714 = vdwg.mxu0
      %715 = vrot.lane.b32.xlu0 %v371, 64
      %v716 = vpop.permute.xlu0 %715
      %v718 = vsel %vm376, %v616, 0
      %v721 = vsel %vm623, %v716, 0
      %723 = vmatprep.subr.bf16.mxu0 0
      %724 = vmatpush1.bf16.msra.mxu0 0
      %725 = vmatprep.subr.bf16.mxu0 0
      %726 = vmatpush1.bf16.msra.mxu0 0
      %727 = vmatprep.subr.bf16.mxu0 0
      %728 = vmatpush1.bf16.msra.mxu0 0
      %729 = vmatprep.subr.bf16.mxu0 0
      %730 = vmatpush1.bf16.msra.mxu0 0
      %731 = vmatprep.subr.bf16.mxu0 0
      %732 = vmatpush1.bf16.msra.mxu0 0
      %733 = vmatprep.subr.bf16.mxu0 0
      %734 = vmatpush1.bf16.msra.mxu0 0
      %735 = vmatprep.subr.bf16.mxu0 0
      %736 = vmatpush1.bf16.msra.mxu0 0
      %737 = vmatprep.subr.bf16.mxu0 0
      %738 = vmatpush1.bf16.msra.mxu0 %v721
      %739 = vmatprep.subr.bf16.mxu0 0
      %740 = vmatpush2.bf16.msra.mxu0 0
      %741 = vmatprep.subr.bf16.mxu0 0
      %742 = vmatpush2.bf16.msra.mxu0 0
      %743 = vmatprep.subr.bf16.mxu0 0
      %744 = vmatpush2.bf16.msra.mxu0 0
      %745 = vmatprep.subr.bf16.mxu0 0
      %746 = vmatpush2.bf16.msra.mxu0 0
      %747 = vmatprep.subr.bf16.mxu0 0
      %748 = vmatpush2.bf16.msra.mxu0 0
      %749 = vmatprep.subr.bf16.mxu0 0
      %750 = vmatpush2.bf16.msra.mxu0 0
      %751 = vmatprep.subr.bf16.mxu0 0
      %752 = vmatpush2.bf16.msra.mxu0 0
      %753 = vmatprep.subr.bf16.mxu0 0
      %754 = vmatpush2.bf16.msra.mxu0 0
      %755 = vmatprep.mubr.bf16.mxu0 0
      %756 = vmatmul.mubr.bf16.gmra.mxu0 %v718
      %v757 = vpop.f32.mrf.mxu0
      %v758 = vadd.f32 0.0, %v757
      %v759 = vpop.f32.mrf.mxu0
      %v760 = vpop.f32.mrf.mxu0
      %v761 = vpop.f32.mrf.mxu0
      %762 = vdwg.mxu0
      %763 = vrot.lane.b32.xlu0 %v372, 64
      %v764 = vpop.permute.xlu0 %763
      %v766 = vsel %vm376, %v617, 0
      %v769 = vsel %vm623, %v764, 0
      %771 = vmatprep.subr.bf16.mxu0 0
      %772 = vmatpush1.bf16.msra.mxu0 0
      %773 = vmatprep.subr.bf16.mxu0 0
      %774 = vmatpush1.bf16.msra.mxu0 0
      %775 = vmatprep.subr.bf16.mxu0 0
      %776 = vmatpush1.bf16.msra.mxu0 0
      %777 = vmatprep.subr.bf16.mxu0 0
      %778 = vmatpush1.bf16.msra.mxu0 0
      %779 = vmatprep.subr.bf16.mxu0 0
      %780 = vmatpush1.bf16.msra.mxu0 0
      %781 = vmatprep.subr.bf16.mxu0 0
      %782 = vmatpush1.bf16.msra.mxu0 0
      %783 = vmatprep.subr.bf16.mxu0 0
      %784 = vmatpush1.bf16.msra.mxu0 0
      %785 = vmatprep.subr.bf16.mxu0 0
      %786 = vmatpush1.bf16.msra.mxu0 %v769
      %787 = vmatprep.subr.bf16.mxu0 0
      %788 = vmatpush2.bf16.msra.mxu0 0
      %789 = vmatprep.subr.bf16.mxu0 0
      %790 = vmatpush2.bf16.msra.mxu0 0
      %791 = vmatprep.subr.bf16.mxu0 0
      %792 = vmatpush2.bf16.msra.mxu0 0
      %793 = vmatprep.subr.bf16.mxu0 0
      %794 = vmatpush2.bf16.msra.mxu0 0
      %795 = vmatprep.subr.bf16.mxu0 0
      %796 = vmatpush2.bf16.msra.mxu0 0
      %797 = vmatprep.subr.bf16.mxu0 0
      %798 = vmatpush2.bf16.msra.mxu0 0
      %799 = vmatprep.subr.bf16.mxu0 0
      %800 = vmatpush2.bf16.msra.mxu0 0
      %801 = vmatprep.subr.bf16.mxu0 0
      %802 = vmatpush2.bf16.msra.mxu0 0
      %803 = vmatprep.mubr.bf16.mxu0 0
      %804 = vmatmul.mubr.bf16.gmra.mxu0 %v766
      %v805 = vpop.f32.mrf.mxu0
      %v806 = vadd.f32 0.0, %v805
      %v807 = vpop.f32.mrf.mxu0
      %v808 = vpop.f32.mrf.mxu0
      %v809 = vpop.f32.mrf.mxu0
      %810 = vdwg.mxu0
      %812 = vrot.lane.b32.xlu0 %v710, 8
      %v813 = vpop.permute.xlu0 %812
      %816 = vrot.lane.b32.xlu0 %v758, 16
      %v817 = vpop.permute.xlu0 %816
      %820 = vrot.lane.b32.xlu0 %v806, 24
      %v821 = vpop.permute.xlu0 %820
      %v823 = vsel %vm376, %v662, %v813
      %vm824 = vcmask 130048
      %v825 = vsel %vm824, %v823, %v817
      %vm826 = vcmask 195584
      %v827 = vsel %vm826, %v825, %v821
      %v828 = vpack.c.bf16 %v827, %v827
      %v829 = vld [vmem:[%s3] sm:$0xf]
      %v830 = vld [vmem:[%s3 + $0x4] sm:$0xf]
      %v831 = vld [vmem:[%s3 + $0x8] sm:$0xf]
      %v832 = vld [vmem:[%s3 + $0xc] sm:$0xf]
      %v833 = vld [vmem:[%s4] sm:$0x1]
      %v835 = vlaneseq
      %v836 = vshrl.u32 %v835, 7
      %v837 = vsub.s32 0, %v836
      %v838 = vrot.slane %v833, %v837
      %v844 = vunpack.c.l.b16 %v829
      %v845 = vunpack.c.l.b16 %v830
      %v846 = vunpack.c.l.b16 %v831
      %v847 = vunpack.c.l.b16 %v832
      %v848 = vpack.c.b16 %v845, %v844
      %v849 = vpack.c.b16 %v847, %v846
      %v853 = vsel %vm300, %v828, 0
      %855 = vmatprep.subr.bf16.mxu0 0
      %856 = vmatpush1.bf16.msra.mxu0 0
      %857 = vmatprep.subr.bf16.mxu0 0
      %858 = vmatpush1.bf16.msra.mxu0 0
      %859 = vmatprep.subr.bf16.mxu0 0
      %860 = vmatpush1.bf16.msra.mxu0 0
      %861 = vmatprep.subr.bf16.mxu0 0
      %862 = vmatpush1.bf16.msra.mxu0 0
      %863 = vmatprep.subr.bf16.mxu0 0
      %864 = vmatpush1.bf16.msra.mxu0 0
      %865 = vmatprep.subr.bf16.mxu0 0
      %866 = vmatpush1.bf16.msra.mxu0 0
      %867 = vmatprep.subr.bf16.mxu0 0
      %868 = vmatpush1.bf16.msra.mxu0 %v849
      %869 = vmatprep.subr.bf16.mxu0 0
      %870 = vmatpush1.bf16.msra.mxu0 %v848
      %871 = vmatprep.subr.bf16.mxu0 0
      %872 = vmatpush2.bf16.msra.mxu0 0
      %873 = vmatprep.subr.bf16.mxu0 0
      %874 = vmatpush2.bf16.msra.mxu0 0
      %875 = vmatprep.subr.bf16.mxu0 0
      %876 = vmatpush2.bf16.msra.mxu0 0
      %877 = vmatprep.subr.bf16.mxu0 0
      %878 = vmatpush2.bf16.msra.mxu0 0
      %879 = vmatprep.subr.bf16.mxu0 0
      %880 = vmatpush2.bf16.msra.mxu0 0
      %881 = vmatprep.subr.bf16.mxu0 0
      %882 = vmatpush2.bf16.msra.mxu0 0
      %883 = vmatprep.subr.bf16.mxu0 0
      %884 = vmatpush2.bf16.msra.mxu0 0
      %885 = vmatprep.subr.bf16.mxu0 0
      %886 = vmatpush2.bf16.msra.mxu0 0
      %887 = vmatprep.mubr.bf16.mxu0 0
      %888 = vmatmul.mubr.bf16.gmra.mxu0 %v853
      %v889 = vpop.f32.mrf.mxu0
      %v890 = vadd.f32 %v838, %v889
      %v891 = vpop.f32.mrf.mxu0
      %v892 = vpop.f32.mrf.mxu0
      %v893 = vpop.f32.mrf.mxu0
      %894 = vdwg.mxu0
      %v895 = vld [vmem:[%s5] sm:$0x1]
      %v896 = vld [vmem:[%s6] sm:$0x1]
      %v897 = vadd.f32 %v275, %v890
      %v898 = vsel %vm300, %v897, 0.0
      %899 = vadd.xlane.f32.xlu0 %v898
      %v900 = vpop.xlane.xlu0 %899
      %v901 = vrcp.pop 32.0
      %v902 = vmul.f32 %v900, %v901
      %v903 = vsub.f32 %v897, %v902
      %v904 = vmul.f32 %v903, %v903
      %v905 = vsel %vm300, %v904, 0.0
      %906 = vadd.xlane.f32.xlu0 %v905
      %v907 = vpop.xlane.xlu0 %906
      %v908 = vmul.f32 %v907, %v901
      %v909 = vadd.f32 %v908, 1e-05
      %v910 = vrsqrt.pop %v909
      %v911 = vmul.f32 %v903, %v910
      %v913 = vlaneseq
      %v914 = vshrl.u32 %v913, 7
      %v915 = vsub.s32 0, %v914
      %v916 = vrot.slane %v895, %v915
      %v918 = vmul.f32 %v911, %v916
      %v920 = vlaneseq
      %v921 = vshrl.u32 %v920, 7
      %v922 = vsub.s32 0, %v921
      %v923 = vrot.slane %v896, %v922
      %v925 = vadd.f32 %v918, %v923
      %926 = vst.msk [vmem:[%s273] sm:$0xff] %vm300, %v925
      %p927 = scmp.lt.s32.totalorder %s18, 1
      %s928 = scalar_select %p927, %s18, 1
      %s929 = smul.addr %s928, 8
      %s930 = scalar_lea.vmem %s7, %s929
      // Predicated region
      $region49: #{_lambda_.2} parent=47 // pred_check
        %p931 = pneg %p188
      $region50: #{_lambda_.2} parent=47 // pred_check_branch
        %933 = sbr.rel (%p931) target = $region52
      $region51: #{_lambda_.2} parent=47 // pred_region
        _
      $region52: #{_lambda_.2} parent=47 // pred_fallthru
        _
    $region48: #{_lambda_.2} parent=5 // pred_fallthru
      _
    %p934 = scmp.le.s32.totalorder 2, %s13
    // Predicated region
    $region53: #{_lambda_.2} parent=5 // pred_check
      %p935 = pneg %p934
    $region54: #{_lambda_.2} parent=5 // pred_check_branch
      %937 = sbr.rel (%p935) target = $region56
    $region55: #{_lambda_.2} parent=5 // pred_region
      %s938 = ssub.s32 %s13, 2
      // Predicated region
      $region57: #{_lambda_.2} parent=55 // pred_check
        %p939 = pneg %p194
      $region58: #{_lambda_.2} parent=55 // pred_check_branch
        %941 = sbr.rel (%p939) target = $region60
      $region59: #{_lambda_.2} parent=55 // pred_region
        %p942 = scmp.lt.s32.totalorder %s19, 1
        %s943 = scalar_select %p942, %s19, 1
        %s944 = smul.addr %s943, 8
        %s945 = scalar_lea.vmem %s7, %s944
      $region60: #{_lambda_.2} parent=55 // pred_fallthru
        _
    $region56: #{_lambda_.2} parent=5 // pred_fallthru
      _
  $region6: #{_lambda_.2} parent=0 // loop_footer
    %s17 = sadd.s32 1, %s13
  $region7: #{_lambda_.2} parent=0 // loop_footer_branch
    %12 = sbr.rel target = $region3
  $region8: #{_lambda_.2} parent=0 // loop_exit
    _

</llo_original>
